<compile_context>
chip_gen: v5e
topology: v5e:2x2
jax: 0.10.0
libtpu: 0.0.40
codegen_flags: <defaults>
</compile_context>

<pallas_src>
import jax
import jax.numpy as jnp
from jax import lax
from jax.experimental import pallas as pl
from jax.experimental.pallas import tpu as pltpu

# Hyperparameters from cnn.py
D_INPUT = 16
D_OUTPUT = 1
DROP_RATE = 0.5          # nn.Dropout(0.5) -> identity at inference time
FILTER_SIZE = 9
IN_CHANN = 4
N_FILTERS = 32
OUTPUT_LAYER_NUMBER = 32


def _pool_flat(x, n, c, op):
    """Reduce `op` over the n length-positions of a flat (B, n*c) activation whose
    flat index is l*c + ch.  Tree-halves while n is even (log2 steps for the common
    power-of-two case), then a short linear tail.  Avoids any lane<->sublane reshape."""
    cur = x
    while n > 1 and n % 2 == 0:
        half = n // 2
        cur = op(cur[:, :half * c], cur[:, half * c:])
        n = half
    out = cur[:, :c]
    for l in range(1, n):
        out = op(out, cur[:, l * c:(l + 1) * c])
    return out


def cnn_kernel(x_ref, w1t_ref, w2t_ref, wl1_ref, bl1_ref, wl2_ref, bl2_ref,
               out_ref, xconv_ref):
    """Fused forward: conv1+relu -> conv2+relu -> max/avg pool -> l1+relu -> l2.

    Each conv layer is a single block-Toeplitz matmul (im2col baked into the weight),
    so the kernel is 4 MXU matmuls + a handful of VPU ops: no per-tap loops, no padded
    VMEM scratch round-trip, no unaligned sublane slicing, and the x_conv store is
    lane-dense.

    x_ref     : (TB, Lp*Cin)        flattened pre-padded input
    w1t_ref   : (Lp*Cin, L1*Cmid)   conv1 as a Toeplitz matrix
    w2t_ref   : (L1*Cmid, L2*Cout)  conv2 (incl. its zero padding) as a Toeplitz matrix
    wl1_ref   : (2*Cout, D_INPUT)   l1 weight (transposed)
    bl1_ref   : (1, D_INPUT)
    wl2_ref   : (D_INPUT, D_OUTPUT) l2 weight (transposed)
    bl2_ref   : (1, D_OUTPUT)
    out_ref   : (TB, D_OUTPUT)      final output
    xconv_ref : (TB, L1*Cmid)       relu(conv1(x)), lane-dense flat layout
    """
    cout = wl1_ref.shape[0] // 2
    l2 = w2t_ref.shape[1] // cout

    # ---- conv1 (stride 1, padding K-1, no bias) + ReLU : one matmul ----
    x1 = jnp.maximum(
        jnp.dot(x_ref[...], w1t_ref[...], preferred_element_type=jnp.float32),
        0.0)                                              # (TB, L1*Cmid)
    xconv_ref[...] = x1.astype(xconv_ref.dtype)           # lane-dense store

    # ---- conv2 (zero padding folded into w2t) + ReLU : one matmul ----
    x2 = jnp.maximum(
        jnp.dot(x1.astype(w2t_ref.dtype), w2t_ref[...],
                preferred_element_type=jnp.float32),
        0.0)                                              # (TB, L2*Cout)

    # ---- global max / avg pool over the length axis, on the flat layout ----
    xmax = _pool_flat(x2, l2, cout, jnp.maximum)          # (TB, Cout)
    xavg = _pool_flat(x2, l2, cout, jnp.add) * (1.0 / l2)  # (TB, Cout)

    # Dropout(p=0.5) is the identity in eval/inference mode.
    # TODO(synk): no training-mode dropout-mask path is implemented.
    # Fused cat + linear1: cat([max, avg], 1) @ Wl1^T == max@Wl1^T[:Cout] + avg@Wl1^T[Cout:]
    h = jnp.dot(xmax, wl1_ref[:cout, :], preferred_element_type=jnp.float32)
    h = h + jnp.dot(xavg, wl1_ref[cout:, :], preferred_element_type=jnp.float32)
    h = jnp.maximum(h + bl1_ref[...], 0.0)                # (TB, D_INPUT)

    out_ref[...] = (jnp.dot(h, wl2_ref[...], preferred_element_type=jnp.float32)
                    + bl2_ref[...]).astype(out_ref.dtype)


def _conv1d_full_toeplitz(w, l_in, l_out, shift, dtype):
    """Build a block-Toeplitz matrix T of shape (l_in*Cin, l_out*Cout) from a
    PyTorch Conv1d weight w:(Cout, Cin, K) such that, with x flattened as
    (l, c) row-major,  y[lo, co] = sum_{k, ci} w[co, ci, k] * x[lo + k - shift, ci]
    (x treated as zero outside [0, l_in)).  shift=0 for a pre-padded input,
    shift=K-1 to fold 'full' zero padding into the matrix."""
    c_out, c_in, k_w = w.shape
    li = jnp.arange(l_in)[:, None]            # (l_in, 1)
    lo = jnp.arange(l_out)[None, :]           # (1, l_out)
    k = li - lo + shift                       # (l_in, l_out)
    valid = (k >= 0) & (k < k_w)
    kc = jnp.clip(k, 0, k_w - 1)
    w_kio = jnp.transpose(w, (2, 1, 0)).astype(dtype)      # (K, Cin, Cout)
    t = w_kio[kc]                                          # (l_in, l_out, Cin, Cout)
    t = jnp.where(valid[:, :, None, None], t, jnp.zeros((), dtype))
    return jnp.transpose(t, (0, 2, 1, 3)).reshape(l_in * c_in, l_out * c_out)


def prepare_params(w1, w2, wl1, bl1, wl2, bl2, seq_len, compute_dtype=jnp.float32):
    """One-time weight preparation (hoisted out of the per-call hot path).
    PyTorch layouts in: w1:(Cmid,Cin,K) w2:(Cout,Cmid,K) wl1:(D_INPUT,2*Cout)
    bl1:(D_INPUT,) wl2:(D_OUTPUT,D_INPUT) bl2:(D_OUTPUT,).
    compute_dtype=jnp.bfloat16 is recommended on v6e/v7x for the conv matmuls
    (accumulation stays f32 in-kernel); default f32 keeps 1e-4 accuracy."""
    K = w1.shape[2]
    P = K - 1
    Lp = seq_len + 2 * P
    L1 = seq_len + K - 1
    L2 = L1 + K - 1
    w1t = _conv1d_full_toeplitz(w1, Lp, L1, 0, compute_dtype)   # (Lp*Cin,  L1*Cmid)
    w2t = _conv1d_full_toeplitz(w2, L1, L2, P, compute_dtype)   # (L1*Cmid, L2*Cout)
    wl1_t = wl1.T.astype(jnp.float32)                           # (2*Cout, D_INPUT)
    bl1_2d = bl1.reshape(1, -1).astype(jnp.float32)
    wl2_t = wl2.T.astype(jnp.float32)                           # (D_INPUT, D_OUTPUT)
    bl2_2d = bl2.reshape(1, -1).astype(jnp.float32)
    return (w1t, w2t, wl1_t, bl1_2d, wl2_t, bl2_2d)


def cnn_forward(x, params):
    """Hot path.  x: (B, Cin, L) PyTorch NCL.  params from prepare_params(seq_len=L).
    Returns (x2:(B, D_OUTPUT), x_conv:(B, N_FILTERS, L+K-1)) matching the PyTorch module."""
    w1t, w2t, wl1_t, bl1_2d, wl2_t, bl2_2d = params
    B, Cin, L = x.shape
    K = FILTER_SIZE
    P = K - 1
    Lp = L + 2 * P
    L1 = L + K - 1
    Cmid = N_FILTERS
    n_out = wl2_t.shape[1]
    assert w1t.shape == (Lp * Cin, L1 * Cmid), "params were built for a different L"

    # Glue: NCL -> channels-last, zero-pad the length, flatten to lane-dense layout.
    xflat = jnp.pad(jnp.transpose(x, (0, 2, 1)),
                    ((0, 0), (P, P), (0, 0))).reshape(B, Lp * Cin)
    xflat = xflat.astype(w1t.dtype)

    TB = B if B <= 256 else 256                  # batch tile per grid step
    grid = (pl.cdiv(B, TB),)
    const = lambda b: (0, 0)                     # weights: constant block -> VMEM-resident

    out, xconv_flat = pl.pallas_call(
        cnn_kernel,
        grid=grid,
        in_specs=[
            pl.BlockSpec((TB, Lp * Cin), lambda b: (b, 0)),
            pl.BlockSpec(w1t.shape, const),
            pl.BlockSpec(w2t.shape, const),
            pl.BlockSpec(wl1_t.shape, const),
            pl.BlockSpec(bl1_2d.shape, const),
            pl.BlockSpec(wl2_t.shape, const),
            pl.BlockSpec(bl2_2d.shape, const),
        ],
        out_specs=(
            pl.BlockSpec((TB, n_out), lambda b: (b, 0)),
            pl.BlockSpec((TB, L1 * Cmid), lambda b: (b, 0)),
        ),
        out_shape=(
            jax.ShapeDtypeStruct((B, n_out), jnp.float32),
            jax.ShapeDtypeStruct((B, L1 * Cmid), jnp.float32),
        ),
        compiler_params=pltpu.CompilerParams(
            dimension_semantics=("parallel",)),
    )(xflat, w1t, w2t, wl1_t, bl1_2d, wl2_t, bl2_2d)

    # Glue: lane-dense flat x_conv back to PyTorch (B, Cmid, L1).
    x_conv = jnp.transpose(xconv_flat.reshape(B, L1, Cmid), (0, 2, 1))
    return out, x_conv


def ref_forward(x, w1, w2, wl1, bl1, wl2, bl2):
    """Pure-JAX reference of the PyTorch forward (eval mode)."""
    dn = ('NCH', 'OIH', 'NCH')
    pad = [(FILTER_SIZE - 1, FILTER_SIZE - 1)]
    c1 = jax.nn.relu(lax.conv_general_dilated(x, w1, (1,), pad, dimension_numbers=dn))
    c2 = jax.nn.relu(lax.conv_general_dilated(c1, w2, (1,), pad, dimension_numbers=dn))
    xmax = jnp.max(c2, axis=2)
    xavg = jnp.mean(c2, axis=2)
    xc = jnp.concatenate([xmax, xavg], axis=1)
    h = jax.nn.relu(xc @ wl1.T + bl1)
    out = h @ wl2.T + bl2
    return out, c1


if __name__ == "__main__":
    key = jax.random.PRNGKey(0)
    ks = jax.random.split(key, 8)

    B, L = 2, 16
    x = jax.random.normal(ks[0], (B, IN_CHANN, L), dtype=jnp.float32)

    # Deterministic parameter init (synthetic; shapes match the nn.Module).
    w1 = 0.1 * jax.random.normal(ks[1], (N_FILTERS, IN_CHANN, FILTER_SIZE), jnp.float32)
    w2 = 0.1 * jax.random.normal(ks[2], (OUTPUT_LAYER_NUMBER, N_FILTERS, FILTER_SIZE), jnp.float32)
    wl1 = 0.1 * jax.random.normal(ks[3], (D_INPUT, OUTPUT_LAYER_NUMBER * 2), jnp.float32)
    bl1 = 0.1 * jax.random.normal(ks[4], (D_INPUT,), jnp.float32)
    wl2 = 0.1 * jax.random.normal(ks[5], (D_OUTPUT, D_INPUT), jnp.float32)
    bl2 = 0.1 * jax.random.normal(ks[6], (D_OUTPUT,), jnp.float32)

    # Weight prep (Toeplitz construction / transposes) runs ONCE, outside the hot path.
    params = prepare_params(w1, w2, wl1, bl1, wl2, bl2, seq_len=L,
                            compute_dtype=jnp.float32)
    params = jax.block_until_ready(params)

    fwd = jax.jit(cnn_forward)
    x2, x_conv = fwd(x, params)
    jax.block_until_ready((x2, x_conv))

    x2_ref, x_conv_ref = ref_forward(x, w1, w2, wl1, bl1, wl2, bl2)
    assert x2.shape == (B, D_OUTPUT)
    assert x_conv.shape == (B, N_FILTERS, L + FILTER_SIZE - 1)
    assert jnp.allclose(x2, x2_ref, atol=1e-4, rtol=1e-4)
    assert jnp.allclose(x_conv, x_conv_ref, atol=1e-4, rtol=1e-4)

    print("KERNEL_OK")
</pallas_src>

<mosaic_0001>
module attributes {stable_mosaic.version = 11 : i64} {
  func.func @cnn_kernel(%arg0: i32, %arg1: memref<2x128xf32, #tpu.memory_space<vmem>>, %arg2: memref<128x768xf32, #tpu.memory_space<vmem>>, %arg3: memref<768x1024xf32, #tpu.memory_space<vmem>>, %arg4: memref<64x16xf32, #tpu.memory_space<vmem>>, %arg5: memref<1x16xf32, #tpu.memory_space<vmem>>, %arg6: memref<16x1xf32, #tpu.memory_space<vmem>>, %arg7: memref<1x1xf32, #tpu.memory_space<vmem>>, %arg8: memref<2x1xf32, #tpu.memory_space<vmem>>, %arg9: memref<2x768xf32, #tpu.memory_space<vmem>>) attributes {dimension_semantics = [#tpu.dimension_semantics<parallel>], iteration_bounds = array<i64: 1>, scalar_prefetch = 0 : i64, scratch_operands = 0 : i64, tpu.core_type = #tpu.core_type<tc>, window_params = [{transform_indices = @transform_0, window_bounds = array<i64: 2, 128>}, {pipeline_mode = #tpu.pipeline_mode<synchronous>, transform_indices = @transform_1, window_bounds = array<i64: 128, 768>}, {pipeline_mode = #tpu.pipeline_mode<synchronous>, transform_indices = @transform_2, window_bounds = array<i64: 768, 1024>}, {pipeline_mode = #tpu.pipeline_mode<synchronous>, transform_indices = @transform_3, window_bounds = array<i64: 64, 16>}, {pipeline_mode = #tpu.pipeline_mode<synchronous>, transform_indices = @transform_4, window_bounds = array<i64: 1, 16>}, {pipeline_mode = #tpu.pipeline_mode<synchronous>, transform_indices = @transform_5, window_bounds = array<i64: 16, 1>}, {pipeline_mode = #tpu.pipeline_mode<synchronous>, transform_indices = @transform_6, window_bounds = array<i64: 1, 1>}, {transform_indices = @transform_7, window_bounds = array<i64: 2, 1>}, {transform_indices = @transform_8, window_bounds = array<i64: 2, 768>}]} {
    %c0 = arith.constant 0 : index
    %c0_0 = arith.constant 0 : index
    %0 = vector.load %arg1[%c0, %c0_0] : memref<2x128xf32, #tpu.memory_space<vmem>>, vector<2x128xf32>
    %c0_1 = arith.constant 0 : index
    %c0_2 = arith.constant 0 : index
    %1 = vector.load %arg2[%c0_1, %c0_2] : memref<128x768xf32, #tpu.memory_space<vmem>>, vector<128x768xf32>
    %cst = arith.constant dense<0.000000e+00> : vector<2x768xf32>
    %2 = tpu.matmul %0, %1, %cst {dimension_numbers = #tpu.dot_dimension_numbers<[1], [0], [0], [1], [0, 0, 1, 1], [], []>} : vector<2x128xf32>, vector<128x768xf32>, vector<2x768xf32> -> vector<2x768xf32>
    %cst_3 = arith.constant 0.000000e+00 : f32
    %3 = vector.broadcast %cst_3 : f32 to vector<2x768xf32>
    %4 = arith.maximumf %2, %3 : vector<2x768xf32>
    %c0_4 = arith.constant 0 : index
    %c0_5 = arith.constant 0 : index
    %5 = vector.load %arg9[%c0_4, %c0_5] : memref<2x768xf32, #tpu.memory_space<vmem>>, vector<2x768xf32>
    tpu.vector_store %arg9[%c0_4, %c0_5], %4 {strides = array<i32>} : memref<2x768xf32, #tpu.memory_space<vmem>>, vector<2x768xf32>,
    %c0_6 = arith.constant 0 : index
    %c0_7 = arith.constant 0 : index
    %6 = vector.load %arg3[%c0_6, %c0_7] : memref<768x1024xf32, #tpu.memory_space<vmem>>, vector<768x1024xf32>
    %cst_8 = arith.constant dense<0.000000e+00> : vector<2x1024xf32>
    %7 = tpu.matmul %4, %6, %cst_8 {dimension_numbers = #tpu.dot_dimension_numbers<[1], [0], [0], [1], [0, 0, 1, 1], [], []>} : vector<2x768xf32>, vector<768x1024xf32>, vector<2x1024xf32> -> vector<2x1024xf32>
    %cst_9 = arith.constant 0.000000e+00 : f32
    %8 = vector.broadcast %cst_9 : f32 to vector<2x1024xf32>
    %9 = arith.maximumf %7, %8 : vector<2x1024xf32>
    %10 = vector.extract_strided_slice %9 {offsets = [0, 0], sizes = [2, 512], strides = [1, 1]} : vector<2x1024xf32> to vector<2x512xf32>
    %11 = vector.extract_strided_slice %9 {offsets = [0, 512], sizes = [2, 512], strides = [1, 1]} : vector<2x1024xf32> to vector<2x512xf32>
    %12 = arith.maximumf %10, %11 : vector<2x512xf32>
    %13 = vector.extract_strided_slice %12 {offsets = [0, 0], sizes = [2, 256], strides = [1, 1]} : vector<2x512xf32> to vector<2x256xf32>
    %14 = vector.extract_strided_slice %12 {offsets = [0, 256], sizes = [2, 256], strides = [1, 1]} : vector<2x512xf32> to vector<2x256xf32>
    %15 = arith.maximumf %13, %14 : vector<2x256xf32>
    %16 = vector.extract_strided_slice %15 {offsets = [0, 0], sizes = [2, 128], strides = [1, 1]} : vector<2x256xf32> to vector<2x128xf32>
    %17 = vector.extract_strided_slice %15 {offsets = [0, 128], sizes = [2, 128], strides = [1, 1]} : vector<2x256xf32> to vector<2x128xf32>
    %18 = arith.maximumf %16, %17 : vector<2x128xf32>
    %19 = vector.extract_strided_slice %18 {offsets = [0, 0], sizes = [2, 64], strides = [1, 1]} : vector<2x128xf32> to vector<2x64xf32>
    %20 = vector.extract_strided_slice %18 {offsets = [0, 64], sizes = [2, 64], strides = [1, 1]} : vector<2x128xf32> to vector<2x64xf32>
    %21 = arith.maximumf %19, %20 : vector<2x64xf32>
    %22 = vector.extract_strided_slice %21 {offsets = [0, 0], sizes = [2, 32], strides = [1, 1]} : vector<2x64xf32> to vector<2x32xf32>
    %23 = vector.extract_strided_slice %21 {offsets = [0, 32], sizes = [2, 32], strides = [1, 1]} : vector<2x64xf32> to vector<2x32xf32>
    %24 = arith.maximumf %22, %23 : vector<2x32xf32>
    %25 = vector.extract_strided_slice %9 {offsets = [0, 0], sizes = [2, 512], strides = [1, 1]} : vector<2x1024xf32> to vector<2x512xf32>
    %26 = vector.extract_strided_slice %9 {offsets = [0, 512], sizes = [2, 512], strides = [1, 1]} : vector<2x1024xf32> to vector<2x512xf32>
    %27 = arith.addf %25, %26 : vector<2x512xf32>
    %28 = vector.extract_strided_slice %27 {offsets = [0, 0], sizes = [2, 256], strides = [1, 1]} : vector<2x512xf32> to vector<2x256xf32>
    %29 = vector.extract_strided_slice %27 {offsets = [0, 256], sizes = [2, 256], strides = [1, 1]} : vector<2x512xf32> to vector<2x256xf32>
    %30 = arith.addf %28, %29 : vector<2x256xf32>
    %31 = vector.extract_strided_slice %30 {offsets = [0, 0], sizes = [2, 128], strides = [1, 1]} : vector<2x256xf32> to vector<2x128xf32>
    %32 = vector.extract_strided_slice %30 {offsets = [0, 128], sizes = [2, 128], strides = [1, 1]} : vector<2x256xf32> to vector<2x128xf32>
    %33 = arith.addf %31, %32 : vector<2x128xf32>
    %34 = vector.extract_strided_slice %33 {offsets = [0, 0], sizes = [2, 64], strides = [1, 1]} : vector<2x128xf32> to vector<2x64xf32>
    %35 = vector.extract_strided_slice %33 {offsets = [0, 64], sizes = [2, 64], strides = [1, 1]} : vector<2x128xf32> to vector<2x64xf32>
    %36 = arith.addf %34, %35 : vector<2x64xf32>
    %37 = vector.extract_strided_slice %36 {offsets = [0, 0], sizes = [2, 32], strides = [1, 1]} : vector<2x64xf32> to vector<2x32xf32>
    %38 = vector.extract_strided_slice %36 {offsets = [0, 32], sizes = [2, 32], strides = [1, 1]} : vector<2x64xf32> to vector<2x32xf32>
    %39 = arith.addf %37, %38 : vector<2x32xf32>
    %cst_10 = arith.constant 3.125000e-02 : f32
    %40 = vector.broadcast %cst_10 : f32 to vector<2x32xf32>
    %41 = arith.mulf %39, %40 : vector<2x32xf32>
    %c0_11 = arith.constant 0 : index
    %c0_12 = arith.constant 0 : index
    %42 = vector.load %arg4[%c0_11, %c0_12] : memref<64x16xf32, #tpu.memory_space<vmem>>, vector<32x16xf32>
    %cst_13 = arith.constant dense<0.000000e+00> : vector<2x16xf32>
    %43 = tpu.matmul %24, %42, %cst_13 {dimension_numbers = #tpu.dot_dimension_numbers<[1], [0], [0], [1], [0, 0, 1, 1], [], []>} : vector<2x32xf32>, vector<32x16xf32>, vector<2x16xf32> -> vector<2x16xf32>
    %c32 = arith.constant 32 : index
    %c0_14 = arith.constant 0 : index
    %44 = vector.load %arg4[%c32, %c0_14] : memref<64x16xf32, #tpu.memory_space<vmem>>, vector<32x16xf32>
    %cst_15 = arith.constant dense<0.000000e+00> : vector<2x16xf32>
    %45 = tpu.matmul %41, %44, %cst_15 {dimension_numbers = #tpu.dot_dimension_numbers<[1], [0], [0], [1], [0, 0, 1, 1], [], []>} : vector<2x32xf32>, vector<32x16xf32>, vector<2x16xf32> -> vector<2x16xf32>
    %46 = arith.addf %43, %45 : vector<2x16xf32>
    %c0_16 = arith.constant 0 : index
    %c0_17 = arith.constant 0 : index
    %47 = vector.load %arg5[%c0_16, %c0_17] : memref<1x16xf32, #tpu.memory_space<vmem>>, vector<1x16xf32>
    %48 = vector.broadcast %47 : vector<1x16xf32> to vector<2x16xf32>
    %49 = arith.addf %46, %48 : vector<2x16xf32>
    %cst_18 = arith.constant 0.000000e+00 : f32
    %50 = vector.broadcast %cst_18 : f32 to vector<2x16xf32>
    %51 = arith.maximumf %49, %50 : vector<2x16xf32>
    %c0_19 = arith.constant 0 : index
    %c0_20 = arith.constant 0 : index
    %52 = vector.load %arg6[%c0_19, %c0_20] : memref<16x1xf32, #tpu.memory_space<vmem>>, vector<16x1xf32>
    %cst_21 = arith.constant dense<0.000000e+00> : vector<2x1xf32>
    %53 = tpu.matmul %51, %52, %cst_21 {dimension_numbers = #tpu.dot_dimension_numbers<[1], [0], [0], [1], [0, 0, 1, 1], [], []>} : vector<2x16xf32>, vector<16x1xf32>, vector<2x1xf32> -> vector<2x1xf32>
    %c0_22 = arith.constant 0 : index
    %c0_23 = arith.constant 0 : index
    %54 = vector.load %arg7[%c0_22, %c0_23] : memref<1x1xf32, #tpu.memory_space<vmem>>, vector<1x1xf32>
    %55 = vector.broadcast %54 : vector<1x1xf32> to vector<2x1xf32>
    %56 = arith.addf %53, %55 : vector<2x1xf32>
    %c0_24 = arith.constant 0 : index
    %c0_25 = arith.constant 0 : index
    %57 = vector.load %arg8[%c0_24, %c0_25] : memref<2x1xf32, #tpu.memory_space<vmem>>, vector<2x1xf32>
    tpu.vector_store %arg8[%c0_24, %c0_25], %56 {strides = array<i32>} : memref<2x1xf32, #tpu.memory_space<vmem>>, vector<2x1xf32>,
    return
  }
  func.func @transform_0(%arg0: i32) -> (i32, i32) {
    %c0_i32 = arith.constant 0 : i32
    %c0_i32_0 = arith.constant 0 : i32
    return %arg0, %c0_i32 : i32, i32
  }
  func.func @transform_1(%arg0: i32) -> (i32, i32) {
    %c0_i32 = arith.constant 0 : i32
    %c0_i32_0 = arith.constant 0 : i32
    %c0_i32_1 = arith.constant 0 : i32
    return %c0_i32, %c0_i32_0 : i32, i32
  }
  func.func @transform_2(%arg0: i32) -> (i32, i32) {
    %c0_i32 = arith.constant 0 : i32
    %c0_i32_0 = arith.constant 0 : i32
    %c0_i32_1 = arith.constant 0 : i32
    return %c0_i32, %c0_i32_0 : i32, i32
  }
  func.func @transform_3(%arg0: i32) -> (i32, i32) {
    %c0_i32 = arith.constant 0 : i32
    %c0_i32_0 = arith.constant 0 : i32
    %c0_i32_1 = arith.constant 0 : i32
    return %c0_i32, %c0_i32_0 : i32, i32
  }
  func.func @transform_4(%arg0: i32) -> (i32, i32) {
    %c0_i32 = arith.constant 0 : i32
    %c0_i32_0 = arith.constant 0 : i32
    %c0_i32_1 = arith.constant 0 : i32
    return %c0_i32, %c0_i32_0 : i32, i32
  }
  func.func @transform_5(%arg0: i32) -> (i32, i32) {
    %c0_i32 = arith.constant 0 : i32
    %c0_i32_0 = arith.constant 0 : i32
    %c0_i32_1 = arith.constant 0 : i32
    return %c0_i32, %c0_i32_0 : i32, i32
  }
  func.func @transform_6(%arg0: i32) -> (i32, i32) {
    %c0_i32 = arith.constant 0 : i32
    %c0_i32_0 = arith.constant 0 : i32
    %c0_i32_1 = arith.constant 0 : i32
    return %c0_i32, %c0_i32_0 : i32, i32
  }
  func.func @transform_7(%arg0: i32) -> (i32, i32) {
    %c0_i32 = arith.constant 0 : i32
    %c0_i32_0 = arith.constant 0 : i32
    return %arg0, %c0_i32 : i32, i32
  }
  func.func @transform_8(%arg0: i32) -> (i32, i32) {
    %c0_i32 = arith.constant 0 : i32
    %c0_i32_0 = arith.constant 0 : i32
    return %arg0, %c0_i32 : i32, i32
  }
}

</mosaic_0001>

<llo_original>
// kernel: cnn_forward.1
$region0: #{cnn_forward.1}
  #allocation0 [shape = 'u32[]', space=smem, size = 0x4, offset = 0x4, fixed_abs, tag = 'smem constant byte address 0x4 - core index']
  #allocation1 [shape = 'u32[72,128]{1,0:T(1,128)}', space=vmem, size = 0x9000, scoped, tag = 'internal scratch']
  #allocation2 [shape = 'f32[1,1]{1,0:T(1,128)S(1)}', space=vmem, size = 0x200, scoped, tag = 'scoped memory for cnn_forward.1']
  %s0 = inlined_call_operand.vmem [shape: f32[2,128], index: 0, kind: input, shape index: {}]
  %s1 = inlined_call_operand.hbm [shape: f32[128,768], index: 1, kind: input, shape index: {}]
  %s2 = inlined_call_operand.hbm [shape: f32[768,1024], index: 2, kind: input, shape index: {}]
  %s3 = inlined_call_operand.vmem [shape: f32[64,16], index: 3, kind: input, shape index: {}]
  %s4 = inlined_call_operand.hbm [shape: f32[1,16], index: 4, kind: input, shape index: {}]
  %s5 = inlined_call_operand.vmem [shape: f32[16,1], index: 5, kind: input, shape index: {}]
  %s6 = inlined_call_operand.<no memory space> [shape: f32[1,1], index: 6, kind: input, shape index: {}]
  %s7 = inlined_call_operand.vmem [shape: f32[2,1], index: 7, kind: output, shape index: {0}]
  %s8 = inlined_call_operand.vmem [shape: f32[2,768], index: 8, kind: output, shape index: {1}]
  %9 = xla_tuple %s7, %s8
  %s10 = sld [smem:[#allocation0]]
  $region58: #{cnn_forward.1} parent=0
    _
  %s12 = ssub.s32 1, %s10
  %s13 = scalar_select 0, %s12, %s10
  %v14 = vstv %s6
  %15 = vst [vmem:[#allocation2] sm:$0x1] %v14
  $region1: #{cnn_forward.1} parent=0
    #allocation3 [shape = 'u8[393216]{0}', space=vmem, size = 0x60000, scoped, tag = 'input window, operand 1, single buffered']
    #allocation4 [shape = 's32[1]{0}', space=sflag, size = 0x4, scoped, tag = 'scoped memory for cnn_forward.1']
    #allocation5 [shape = 'u8[3145728]{0}', space=vmem, size = 0x300000, scoped, tag = 'input window, operand 2, single buffered']
    #allocation6 [shape = 's32[1]{0}', space=sflag, size = 0x4, scoped, tag = 'scoped memory for cnn_forward.1']
    #allocation7 [shape = 'u8[512]{0}', space=vmem, size = 0x400, scoped, tag = 'input window, operand 4, single buffered']
    %16 = vsyncpa [#allocation4], 0
    %17 = vsyncpa [#allocation6], 0
    // Predicated region
    $region2: #{cnn_forward.1} parent=1 // pred_check
      _
    $region3: #{cnn_forward.1} parent=1 // pred_check_branch
      %19 = sbr.rel (0) target = $region5
    $region4: #{cnn_forward.1} parent=1 // pred_region
      _
    $region5: #{cnn_forward.1} parent=1 // pred_fallthru
      _
    // Predicated region
    $region6: #{cnn_forward.1} parent=1 // pred_check
      _
    $region7: #{cnn_forward.1} parent=1 // pred_check_branch
      %21 = sbr.rel (0) target = $region9
    $region8: #{cnn_forward.1} parent=1 // pred_region
      %23 = vsyncadd [#allocation4], 0
      %s24 = sshll.u32 %s1, 4
      %s25 = int_to_ptr.hbm [resolvable:$true] %s24
      %s26 = sshll.u32 [#allocation3], 4
      %s27 = int_to_ptr.vmem [resolvable:$true] %s26
      %32 = dma.hbm_to_vmem [thread:$0]  %s25, 12288, %s27, [#allocation4], 768, 768, 48
    $region9: #{cnn_forward.1} parent=1 // pred_fallthru
      _
    // Predicated region
    $region10: #{cnn_forward.1} parent=1 // pred_check
      _
    $region11: #{cnn_forward.1} parent=1 // pred_check_branch
      %34 = sbr.rel (0) target = $region13
    $region12: #{cnn_forward.1} parent=1 // pred_region
      %36 = vsyncadd [#allocation6], 0
      %s37 = sshll.u32 %s2, 4
      %s38 = int_to_ptr.hbm [resolvable:$true] %s37
      %s39 = sshll.u32 [#allocation5], 4
      %s40 = int_to_ptr.vmem [resolvable:$true] %s39
      %45 = dma.hbm_to_vmem [thread:$0]  %s38, 98304, %s40, [#allocation6], 1024, 1024, 64
    $region13: #{cnn_forward.1} parent=1 // pred_fallthru
      _
    // Predicated region
    $region14: #{cnn_forward.1} parent=1 // pred_check
      _
    $region15: #{cnn_forward.1} parent=1 // pred_check_branch
      %47 = sbr.rel (0) target = $region17
    $region16: #{cnn_forward.1} parent=1 // pred_region
      _
    $region17: #{cnn_forward.1} parent=1 // pred_fallthru
      _
    // Predicated region
    $region18: #{cnn_forward.1} parent=1 // pred_check
      _
    $region19: #{cnn_forward.1} parent=1 // pred_check_branch
      %49 = sbr.rel (0) target = $region21
    $region20: #{cnn_forward.1} parent=1 // pred_region
      %51 = vsyncadd [#allocation6], 0
      %s53 = sshll.u32 %s4, 4
      %s54 = int_to_ptr.hbm [resolvable:$true] %s53
      %s55 = sshll.u32 [#allocation7], 4
      %s56 = int_to_ptr.vmem [resolvable:$true] %s55
      %58 = dma.hbm_to_vmem [thread:$0]  %s54, 16, %s56, [#allocation6]
    $region21: #{cnn_forward.1} parent=1 // pred_fallthru
      _
    // Predicated region
    $region22: #{cnn_forward.1} parent=1 // pred_check
      _
    $region23: #{cnn_forward.1} parent=1 // pred_check_branch
      %60 = sbr.rel (0) target = $region25
    $region24: #{cnn_forward.1} parent=1 // pred_region
      _
    $region25: #{cnn_forward.1} parent=1 // pred_fallthru
      _
    // Predicated region
    $region26: #{cnn_forward.1} parent=1 // pred_check
      _
    $region27: #{cnn_forward.1} parent=1 // pred_check_branch
      %62 = sbr.rel (0) target = $region29
    $region28: #{cnn_forward.1} parent=1 // pred_region
      _
    $region29: #{cnn_forward.1} parent=1 // pred_fallthru
      _
    // Predicated region
    $region30: #{cnn_forward.1} parent=1 // pred_check
      _
    $region31: #{cnn_forward.1} parent=1 // pred_check_branch
      %64 = sbr.rel (0) target = $region33
    $region32: #{cnn_forward.1} parent=1 // pred_region
      %66 = dma.done [#allocation4], 12288
    $region33: #{cnn_forward.1} parent=1 // pred_fallthru
      _
    // Predicated region
    $region34: #{cnn_forward.1} parent=1 // pred_check
      _
    $region35: #{cnn_forward.1} parent=1 // pred_check_branch
      %68 = sbr.rel (0) target = $region37
    $region36: #{cnn_forward.1} parent=1 // pred_region
      %70 = dma.done [#allocation6], 98304
    $region37: #{cnn_forward.1} parent=1 // pred_fallthru
      _
    // Predicated region
    $region38: #{cnn_forward.1} parent=1 // pred_check
      _
    $region39: #{cnn_forward.1} parent=1 // pred_check_branch
      %72 = sbr.rel (0) target = $region41
    $region40: #{cnn_forward.1} parent=1 // pred_region
      %74 = dma.done [#allocation6], 16
    $region41: #{cnn_forward.1} parent=1 // pred_fallthru
      _
    %v75 = vld [vmem:[%s0] sm:$0x3]
    %v76 = vld [vmem:[#allocation3] sm:$0xff]
    %v77 = vld [vmem:[#allocation3 + $0x8] sm:$0xff]
    %v78 = vld [vmem:[#allocation3 + $0x10] sm:$0xff]
    %v79 = vld [vmem:[#allocation3 + $0x18] sm:$0xff]
    %v80 = vld [vmem:[#allocation3 + $0x20] sm:$0xff]
    %v81 = vld [vmem:[#allocation3 + $0x28] sm:$0xff]
    %v82 = vld [vmem:[#allocation3 + $0x30] sm:$0xff]
    %v83 = vld [vmem:[#allocation3 + $0x38] sm:$0xff]
    %v84 = vld [vmem:[#allocation3 + $0x40] sm:$0xff]
    %v85 = vld [vmem:[#allocation3 + $0x48] sm:$0xff]
    %v86 = vld [vmem:[#allocation3 + $0x50] sm:$0xff]
    %v87 = vld [vmem:[#allocation3 + $0x58] sm:$0xff]
    %v88 = vld [vmem:[#allocation3 + $0x60] sm:$0xff]
    %v89 = vld [vmem:[#allocation3 + $0x68] sm:$0xff]
    %v90 = vld [vmem:[#allocation3 + $0x70] sm:$0xff]
    %v91 = vld [vmem:[#allocation3 + $0x78] sm:$0xff]
    %v92 = vld [vmem:[#allocation3 + $0x80] sm:$0xff]
    %v93 = vld [vmem:[#allocation3 + $0x88] sm:$0xff]
    %v94 = vld [vmem:[#allocation3 + $0x90] sm:$0xff]
    %v95 = vld [vmem:[#allocation3 + $0x98] sm:$0xff]
    %v96 = vld [vmem:[#allocation3 + $0xa0] sm:$0xff]
    %v97 = vld [vmem:[#allocation3 + $0xa8] sm:$0xff]
    %v98 = vld [vmem:[#allocation3 + $0xb0] sm:$0xff]
    %v99 = vld [vmem:[#allocation3 + $0xb8] sm:$0xff]
    %v100 = vld [vmem:[#allocation3 + $0xc0] sm:$0xff]
    %v101 = vld [vmem:[#allocation3 + $0xc8] sm:$0xff]
    %v102 = vld [vmem:[#allocation3 + $0xd0] sm:$0xff]
    %v103 = vld [vmem:[#allocation3 + $0xd8] sm:$0xff]
    %v104 = vld [vmem:[#allocation3 + $0xe0] sm:$0xff]
    %v105 = vld [vmem:[#allocation3 + $0xe8] sm:$0xff]
    %v106 = vld [vmem:[#allocation3 + $0xf0] sm:$0xff]
    %v107 = vld [vmem:[#allocation3 + $0xf8] sm:$0xff]
    %v108 = vld [vmem:[#allocation3 + $0x100] sm:$0xff]
    %v109 = vld [vmem:[#allocation3 + $0x108] sm:$0xff]
    %v110 = vld [vmem:[#allocation3 + $0x110] sm:$0xff]
    %v111 = vld [vmem:[#allocation3 + $0x118] sm:$0xff]
    %v112 = vld [vmem:[#allocation3 + $0x120] sm:$0xff]
    %v113 = vld [vmem:[#allocation3 + $0x128] sm:$0xff]
    %v114 = vld [vmem:[#allocation3 + $0x130] sm:$0xff]
    %v115 = vld [vmem:[#allocation3 + $0x138] sm:$0xff]
    %v116 = vld [vmem:[#allocation3 + $0x140] sm:$0xff]
    %v117 = vld [vmem:[#allocation3 + $0x148] sm:$0xff]
    %v118 = vld [vmem:[#allocation3 + $0x150] sm:$0xff]
    %v119 = vld [vmem:[#allocation3 + $0x158] sm:$0xff]
    %v120 = vld [vmem:[#allocation3 + $0x160] sm:$0xff]
    %v121 = vld [vmem:[#allocation3 + $0x168] sm:$0xff]
    %v122 = vld [vmem:[#allocation3 + $0x170] sm:$0xff]
    %v123 = vld [vmem:[#allocation3 + $0x178] sm:$0xff]
    %v124 = vld [vmem:[#allocation3 + $0x180] sm:$0xff]
    %v125 = vld [vmem:[#allocation3 + $0x188] sm:$0xff]
    %v126 = vld [vmem:[#allocation3 + $0x190] sm:$0xff]
    %v127 = vld [vmem:[#allocation3 + $0x198] sm:$0xff]
    %v128 = vld [vmem:[#allocation3 + $0x1a0] sm:$0xff]
    %v129 = vld [vmem:[#allocation3 + $0x1a8] sm:$0xff]
    %v130 = vld [vmem:[#allocation3 + $0x1b0] sm:$0xff]
    %v131 = vld [vmem:[#allocation3 + $0x1b8] sm:$0xff]
    %v132 = vld [vmem:[#allocation3 + $0x1c0] sm:$0xff]
    %v133 = vld [vmem:[#allocation3 + $0x1c8] sm:$0xff]
    %v134 = vld [vmem:[#allocation3 + $0x1d0] sm:$0xff]
    %v135 = vld [vmem:[#allocation3 + $0x1d8] sm:$0xff]
    %v136 = vld [vmem:[#allocation3 + $0x1e0] sm:$0xff]
    %v137 = vld [vmem:[#allocation3 + $0x1e8] sm:$0xff]
    %v138 = vld [vmem:[#allocation3 + $0x1f0] sm:$0xff]
    %v139 = vld [vmem:[#allocation3 + $0x1f8] sm:$0xff]
    %v140 = vld [vmem:[#allocation3 + $0x200] sm:$0xff]
    %v141 = vld [vmem:[#allocation3 + $0x208] sm:$0xff]
    %v142 = vld [vmem:[#allocation3 + $0x210] sm:$0xff]
    %v143 = vld [vmem:[#allocation3 + $0x218] sm:$0xff]
    %v144 = vld [vmem:[#allocation3 + $0x220] sm:$0xff]
    %v145 = vld [vmem:[#allocation3 + $0x228] sm:$0xff]
    %v146 = vld [vmem:[#allocation3 + $0x230] sm:$0xff]
    %v147 = vld [vmem:[#allocation3 + $0x238] sm:$0xff]
    %v148 = vld [vmem:[#allocation3 + $0x240] sm:$0xff]
    %v149 = vld [vmem:[#allocation3 + $0x248] sm:$0xff]
    %v150 = vld [vmem:[#allocation3 + $0x250] sm:$0xff]
    %v151 = vld [vmem:[#allocation3 + $0x258] sm:$0xff]
    %v152 = vld [vmem:[#allocation3 + $0x260] sm:$0xff]
    %v153 = vld [vmem:[#allocation3 + $0x268] sm:$0xff]
    %v154 = vld [vmem:[#allocation3 + $0x270] sm:$0xff]
    %v155 = vld [vmem:[#allocation3 + $0x278] sm:$0xff]
    %v156 = vld [vmem:[#allocation3 + $0x280] sm:$0xff]
    %v157 = vld [vmem:[#allocation3 + $0x288] sm:$0xff]
    %v158 = vld [vmem:[#allocation3 + $0x290] sm:$0xff]
    %v159 = vld [vmem:[#allocation3 + $0x298] sm:$0xff]
    %v160 = vld [vmem:[#allocation3 + $0x2a0] sm:$0xff]
    %v161 = vld [vmem:[#allocation3 + $0x2a8] sm:$0xff]
    %v162 = vld [vmem:[#allocation3 + $0x2b0] sm:$0xff]
    %v163 = vld [vmem:[#allocation3 + $0x2b8] sm:$0xff]
    %v164 = vld [vmem:[#allocation3 + $0x2c0] sm:$0xff]
    %v165 = vld [vmem:[#allocation3 + $0x2c8] sm:$0xff]
    %v166 = vld [vmem:[#allocation3 + $0x2d0] sm:$0xff]
    %v167 = vld [vmem:[#allocation3 + $0x2d8] sm:$0xff]
    %v168 = vld [vmem:[#allocation3 + $0x2e0] sm:$0xff]
    %v169 = vld [vmem:[#allocation3 + $0x2e8] sm:$0xff]
    %v170 = vld [vmem:[#allocation3 + $0x2f0] sm:$0xff]
    %v171 = vld [vmem:[#allocation3 + $0x2f8] sm:$0xff]
    %172 = vmatpush.msra.mxu0 %v166
    %173 = vmatpush.msra.mxu0 %v160
    %174 = vmatpush.msra.mxu0 %v154
    %175 = vmatpush.msra.mxu0 %v148
    %176 = vmatpush.msra.mxu0 %v142
    %177 = vmatpush.msra.mxu0 %v136
    %178 = vmatpush.msra.mxu0 %v130
    %179 = vmatpush.msra.mxu0 %v124
    %180 = vmatpush.msra.mxu0 %v118
    %181 = vmatpush.msra.mxu0 %v112
    %182 = vmatpush.msra.mxu0 %v106
    %183 = vmatpush.msra.mxu0 %v100
    %184 = vmatpush.msra.mxu0 %v94
    %185 = vmatpush.msra.mxu0 %v88
    %186 = vmatpush.msra.mxu0 %v82
    %187 = vmatpush.msra.mxu0 %v76
    %188 = vmatmul.f32.gmra.mxu0 %v75
    %v189 = vpop.f32.mrf.mxu0
    %v190 = vadd.f32 0.0, %v189
    %191 = vdwg.mxu0
    %192 = vmatpush.msra.mxu0 %v167
    %193 = vmatpush.msra.mxu0 %v161
    %194 = vmatpush.msra.mxu0 %v155
    %195 = vmatpush.msra.mxu0 %v149
    %196 = vmatpush.msra.mxu0 %v143
    %197 = vmatpush.msra.mxu0 %v137
    %198 = vmatpush.msra.mxu0 %v131
    %199 = vmatpush.msra.mxu0 %v125
    %200 = vmatpush.msra.mxu0 %v119
    %201 = vmatpush.msra.mxu0 %v113
    %202 = vmatpush.msra.mxu0 %v107
    %203 = vmatpush.msra.mxu0 %v101
    %204 = vmatpush.msra.mxu0 %v95
    %205 = vmatpush.msra.mxu0 %v89
    %206 = vmatpush.msra.mxu0 %v83
    %207 = vmatpush.msra.mxu0 %v77
    %208 = vmatmul.f32.gmra.mxu0 %v75
    %v209 = vpop.f32.mrf.mxu0
    %v210 = vadd.f32 0.0, %v209
    %211 = vdwg.mxu0
    %212 = vmatpush.msra.mxu0 %v168
    %213 = vmatpush.msra.mxu0 %v162
    %214 = vmatpush.msra.mxu0 %v156
    %215 = vmatpush.msra.mxu0 %v150
    %216 = vmatpush.msra.mxu0 %v144
    %217 = vmatpush.msra.mxu0 %v138
    %218 = vmatpush.msra.mxu0 %v132
    %219 = vmatpush.msra.mxu0 %v126
    %220 = vmatpush.msra.mxu0 %v120
    %221 = vmatpush.msra.mxu0 %v114
    %222 = vmatpush.msra.mxu0 %v108
    %223 = vmatpush.msra.mxu0 %v102
    %224 = vmatpush.msra.mxu0 %v96
    %225 = vmatpush.msra.mxu0 %v90
    %226 = vmatpush.msra.mxu0 %v84
    %227 = vmatpush.msra.mxu0 %v78
    %228 = vmatmul.f32.gmra.mxu0 %v75
    %v229 = vpop.f32.mrf.mxu0
    %v230 = vadd.f32 0.0, %v229
    %231 = vdwg.mxu0
    %232 = vmatpush.msra.mxu0 %v169
    %233 = vmatpush.msra.mxu0 %v163
    %234 = vmatpush.msra.mxu0 %v157
    %235 = vmatpush.msra.mxu0 %v151
    %236 = vmatpush.msra.mxu0 %v145
    %237 = vmatpush.msra.mxu0 %v139
    %238 = vmatpush.msra.mxu0 %v133
    %239 = vmatpush.msra.mxu0 %v127
    %240 = vmatpush.msra.mxu0 %v121
    %241 = vmatpush.msra.mxu0 %v115
    %242 = vmatpush.msra.mxu0 %v109
    %243 = vmatpush.msra.mxu0 %v103
    %244 = vmatpush.msra.mxu0 %v97
    %245 = vmatpush.msra.mxu0 %v91
    %246 = vmatpush.msra.mxu0 %v85
    %247 = vmatpush.msra.mxu0 %v79
    %248 = vmatmul.f32.gmra.mxu0 %v75
    %v249 = vpop.f32.mrf.mxu0
    %v250 = vadd.f32 0.0, %v249
    %251 = vdwg.mxu0
    %252 = vmatpush.msra.mxu0 %v170
    %253 = vmatpush.msra.mxu0 %v164
    %254 = vmatpush.msra.mxu0 %v158
    %255 = vmatpush.msra.mxu0 %v152
    %256 = vmatpush.msra.mxu0 %v146
    %257 = vmatpush.msra.mxu0 %v140
    %258 = vmatpush.msra.mxu0 %v134
    %259 = vmatpush.msra.mxu0 %v128
    %260 = vmatpush.msra.mxu0 %v122
    %261 = vmatpush.msra.mxu0 %v116
    %262 = vmatpush.msra.mxu0 %v110
    %263 = vmatpush.msra.mxu0 %v104
    %264 = vmatpush.msra.mxu0 %v98
    %265 = vmatpush.msra.mxu0 %v92
    %266 = vmatpush.msra.mxu0 %v86
    %267 = vmatpush.msra.mxu0 %v80
    %268 = vmatmul.f32.gmra.mxu0 %v75
    %v269 = vpop.f32.mrf.mxu0
    %v270 = vadd.f32 0.0, %v269
    %271 = vdwg.mxu0
    %272 = vmatpush.msra.mxu0 %v171
    %273 = vmatpush.msra.mxu0 %v165
    %274 = vmatpush.msra.mxu0 %v159
    %275 = vmatpush.msra.mxu0 %v153
    %276 = vmatpush.msra.mxu0 %v147
    %277 = vmatpush.msra.mxu0 %v141
    %278 = vmatpush.msra.mxu0 %v135
    %279 = vmatpush.msra.mxu0 %v129
    %280 = vmatpush.msra.mxu0 %v123
    %281 = vmatpush.msra.mxu0 %v117
    %282 = vmatpush.msra.mxu0 %v111
    %283 = vmatpush.msra.mxu0 %v105
    %284 = vmatpush.msra.mxu0 %v99
    %285 = vmatpush.msra.mxu0 %v93
    %286 = vmatpush.msra.mxu0 %v87
    %287 = vmatpush.msra.mxu0 %v81
    %288 = vmatmul.f32.gmra.mxu0 %v75
    %v289 = vpop.f32.mrf.mxu0
    %v290 = vadd.f32 0.0, %v289
    %291 = vdwg.mxu0
    %v292 = vmax.f32 %v190, 0.0
    %v293 = vmax.f32 %v210, 0.0
    %v294 = vmax.f32 %v230, 0.0
    %v295 = vmax.f32 %v250, 0.0
    %v296 = vmax.f32 %v270, 0.0
    %v297 = vmax.f32 %v290, 0.0
    %v304 = vrot.slane %v293, 6
    %v305 = vrot.slane %v294, 4
    %v306 = vrot.slane %v295, 2
    %v307 = vrot.slane %v297, 6
    %vm308 = vcmask 1041408
    %v309 = vsel %vm308, %v292, %v304
    %vm310 = vcmask 1045508
    %v311 = vsel %vm310, %v305, %v306
    %vm312 = vcmask 1043456
    %v313 = vsel %vm312, %v309, %v311
    %v314 = vsel %vm308, %v296, %v307
    %317 = vst [vmem:[%s8] sm:$0xff] %v313
    %318 = vst [vmem:[%s8 + $0x8] sm:$0xf] %v314
    %v319 = vld [vmem:[#allocation5] sm:$0xff]
    %v320 = vld [vmem:[#allocation5 + $0x8] sm:$0xff]
    %v321 = vld [vmem:[#allocation5 + $0x10] sm:$0xff]
    %v322 = vld [vmem:[#allocation5 + $0x18] sm:$0xff]
    %v323 = vld [vmem:[#allocation5 + $0x20] sm:$0xff]
    %v324 = vld [vmem:[#allocation5 + $0x28] sm:$0xff]
    %v325 = vld [vmem:[#allocation5 + $0x30] sm:$0xff]
    %v326 = vld [vmem:[#allocation5 + $0x38] sm:$0xff]
    %v327 = vld [vmem:[#allocation5 + $0x40] sm:$0xff]
    %v328 = vld [vmem:[#allocation5 + $0x48] sm:$0xff]
    %v329 = vld [vmem:[#allocation5 + $0x50] sm:$0xff]
    %v330 = vld [vmem:[#allocation5 + $0x58] sm:$0xff]
    %v331 = vld [vmem:[#allocation5 + $0x60] sm:$0xff]
    %v332 = vld [vmem:[#allocation5 + $0x68] sm:$0xff]
    %v333 = vld [vmem:[#allocation5 + $0x70] sm:$0xff]
    %v334 = vld [vmem:[#allocation5 + $0x78] sm:$0xff]
    %v335 = vld [vmem:[#allocation5 + $0x80] sm:$0xff]
    %v336 = vld [vmem:[#allocation5 + $0x88] sm:$0xff]
    %v337 = vld [vmem:[#allocation5 + $0x90] sm:$0xff]
    %v338 = vld [vmem:[#allocation5 + $0x98] sm:$0xff]
    %v339 = vld [vmem:[#allocation5 + $0xa0] sm:$0xff]
    %v340 = vld [vmem:[#allocation5 + $0xa8] sm:$0xff]
    %v341 = vld [vmem:[#allocation5 + $0xb0] sm:$0xff]
    %v342 = vld [vmem:[#allocation5 + $0xb8] sm:$0xff]
    %v343 = vld [vmem:[#allocation5 + $0xc0] sm:$0xff]
    %v344 = vld [vmem:[#allocation5 + $0xc8] sm:$0xff]
    %v345 = vld [vmem:[#allocation5 + $0xd0] sm:$0xff]
    %v346 = vld [vmem:[#allocation5 + $0xd8] sm:$0xff]
    %v347 = vld [vmem:[#allocation5 + $0xe0] sm:$0xff]
    %v348 = vld [vmem:[#allocation5 + $0xe8] sm:$0xff]
    %v349 = vld [vmem:[#allocation5 + $0xf0] sm:$0xff]
    %v350 = vld [vmem:[#allocation5 + $0xf8] sm:$0xff]
    %v351 = vld [vmem:[#allocation5 + $0x100] sm:$0xff]
    %v352 = vld [vmem:[#allocation5 + $0x108] sm:$0xff]
    %v353 = vld [vmem:[#allocation5 + $0x110] sm:$0xff]
    %v354 = vld [vmem:[#allocation5 + $0x118] sm:$0xff]
    %v355 = vld [vmem:[#allocation5 + $0x120] sm:$0xff]
    %v356 = vld [vmem:[#allocation5 + $0x128] sm:$0xff]
    %v357 = vld [vmem:[#allocation5 + $0x130] sm:$0xff]
    %v358 = vld [vmem:[#allocation5 + $0x138] sm:$0xff]
    %v359 = vld [vmem:[#allocation5 + $0x140] sm:$0xff]
    %v360 = vld [vmem:[#allocation5 + $0x148] sm:$0xff]
    %v361 = vld [vmem:[#allocation5 + $0x150] sm:$0xff]
    %v362 = vld [vmem:[#allocation5 + $0x158] sm:$0xff]
    %v363 = vld [vmem:[#allocation5 + $0x160] sm:$0xff]
    %v364 = vld [vmem:[#allocation5 + $0x168] sm:$0xff]
    %v365 = vld [vmem:[#allocation5 + $0x170] sm:$0xff]
    %v366 = vld [vmem:[#allocation5 + $0x178] sm:$0xff]
    %v367 = vld [vmem:[#allocation5 + $0x180] sm:$0xff]
    %v368 = vld [vmem:[#allocation5 + $0x188] sm:$0xff]
    %v369 = vld [vmem:[#allocation5 + $0x190] sm:$0xff]
    %v370 = vld [vmem:[#allocation5 + $0x198] sm:$0xff]
    %v371 = vld [vmem:[#allocation5 + $0x1a0] sm:$0xff]
    %v372 = vld [vmem:[#allocation5 + $0x1a8] sm:$0xff]
    %v373 = vld [vmem:[#allocation5 + $0x1b0] sm:$0xff]
    %v374 = vld [vmem:[#allocation5 + $0x1b8] sm:$0xff]
    %v375 = vld [vmem:[#allocation5 + $0x1c0] sm:$0xff]
    %v376 = vld [vmem:[#allocation5 + $0x1c8] sm:$0xff]
    %v377 = vld [vmem:[#allocation5 + $0x1d0] sm:$0xff]
    %v378 = vld [vmem:[#allocation5 + $0x1d8] sm:$0xff]
    %v379 = vld [vmem:[#allocation5 + $0x1e0] sm:$0xff]
    %v380 = vld [vmem:[#allocation5 + $0x1e8] sm:$0xff]
    %v381 = vld [vmem:[#allocation5 + $0x1f0] sm:$0xff]
    %v382 = vld [vmem:[#allocation5 + $0x1f8] sm:$0xff]
    %v383 = vld [vmem:[#allocation5 + $0x200] sm:$0xff]
    %v384 = vld [vmem:[#allocation5 + $0x208] sm:$0xff]
    %v385 = vld [vmem:[#allocation5 + $0x210] sm:$0xff]
    %v386 = vld [vmem:[#allocation5 + $0x218] sm:$0xff]
    %v387 = vld [vmem:[#allocation5 + $0x220] sm:$0xff]
    %v388 = vld [vmem:[#allocation5 + $0x228] sm:$0xff]
    %v389 = vld [vmem:[#allocation5 + $0x230] sm:$0xff]
    %v390 = vld [vmem:[#allocation5 + $0x238] sm:$0xff]
    %v391 = vld [vmem:[#allocation5 + $0x240] sm:$0xff]
    %v392 = vld [vmem:[#allocation5 + $0x248] sm:$0xff]
    %v393 = vld [vmem:[#allocation5 + $0x250] sm:$0xff]
    %v394 = vld [vmem:[#allocation5 + $0x258] sm:$0xff]
    %v395 = vld [vmem:[#allocation5 + $0x260] sm:$0xff]
    %v396 = vld [vmem:[#allocation5 + $0x268] sm:$0xff]
    %v397 = vld [vmem:[#allocation5 + $0x270] sm:$0xff]
    %v398 = vld [vmem:[#allocation5 + $0x278] sm:$0xff]
    %v399 = vld [vmem:[#allocation5 + $0x280] sm:$0xff]
    %v400 = vld [vmem:[#allocation5 + $0x288] sm:$0xff]
    %v401 = vld [vmem:[#allocation5 + $0x290] sm:$0xff]
    %v402 = vld [vmem:[#allocation5 + $0x298] sm:$0xff]
    %v403 = vld [vmem:[#allocation5 + $0x2a0] sm:$0xff]
    %v404 = vld [vmem:[#allocation5 + $0x2a8] sm:$0xff]
    %v405 = vld [vmem:[#allocation5 + $0x2b0] sm:$0xff]
    %v406 = vld [vmem:[#allocation5 + $0x2b8] sm:$0xff]
    %v407 = vld [vmem:[#allocation5 + $0x2c0] sm:$0xff]
    %v408 = vld [vmem:[#allocation5 + $0x2c8] sm:$0xff]
    %v409 = vld [vmem:[#allocation5 + $0x2d0] sm:$0xff]
    %v410 = vld [vmem:[#allocation5 + $0x2d8] sm:$0xff]
    %v411 = vld [vmem:[#allocation5 + $0x2e0] sm:$0xff]
    %v412 = vld [vmem:[#allocation5 + $0x2e8] sm:$0xff]
    %v413 = vld [vmem:[#allocation5 + $0x2f0] sm:$0xff]
    %v414 = vld [vmem:[#allocation5 + $0x2f8] sm:$0xff]
    %v415 = vld [vmem:[#allocation5 + $0x300] sm:$0xff]
    %v416 = vld [vmem:[#allocation5 + $0x308] sm:$0xff]
    %v417 = vld [vmem:[#allocation5 + $0x310] sm:$0xff]
    %v418 = vld [vmem:[#allocation5 + $0x318] sm:$0xff]
    %v419 = vld [vmem:[#allocation5 + $0x320] sm:$0xff]
    %v420 = vld [vmem:[#allocation5 + $0x328] sm:$0xff]
    %v421 = vld [vmem:[#allocation5 + $0x330] sm:$0xff]
    %v422 = vld [vmem:[#allocation5 + $0x338] sm:$0xff]
    %v423 = vld [vmem:[#allocation5 + $0x340] sm:$0xff]
    %v424 = vld [vmem:[#allocation5 + $0x348] sm:$0xff]
    %v425 = vld [vmem:[#allocation5 + $0x350] sm:$0xff]
    %v426 = vld [vmem:[#allocation5 + $0x358] sm:$0xff]
    %v427 = vld [vmem:[#allocation5 + $0x360] sm:$0xff]
    %v428 = vld [vmem:[#allocation5 + $0x368] sm:$0xff]
    %v429 = vld [vmem:[#allocation5 + $0x370] sm:$0xff]
    %v430 = vld [vmem:[#allocation5 + $0x378] sm:$0xff]
    %v431 = vld [vmem:[#allocation5 + $0x380] sm:$0xff]
    %v432 = vld [vmem:[#allocation5 + $0x388] sm:$0xff]
    %v433 = vld [vmem:[#allocation5 + $0x390] sm:$0xff]
    %v434 = vld [vmem:[#allocation5 + $0x398] sm:$0xff]
    %v435 = vld [vmem:[#allocation5 + $0x3a0] sm:$0xff]
    %v436 = vld [vmem:[#allocation5 + $0x3a8] sm:$0xff]
    %v437 = vld [vmem:[#allocation5 + $0x3b0] sm:$0xff]
    %v438 = vld [vmem:[#allocation5 + $0x3b8] sm:$0xff]
    %v439 = vld [vmem:[#allocation5 + $0x3c0] sm:$0xff]
    %v440 = vld [vmem:[#allocation5 + $0x3c8] sm:$0xff]
    %v441 = vld [vmem:[#allocation5 + $0x3d0] sm:$0xff]
    %v442 = vld [vmem:[#allocation5 + $0x3d8] sm:$0xff]
    %v443 = vld [vmem:[#allocation5 + $0x3e0] sm:$0xff]
    %v444 = vld [vmem:[#allocation5 + $0x3e8] sm:$0xff]
    %v445 = vld [vmem:[#allocation5 + $0x3f0] sm:$0xff]
    %v446 = vld [vmem:[#allocation5 + $0x3f8] sm:$0xff]
    %v447 = vld [vmem:[#allocation5 + $0x400] sm:$0xff]
    %v448 = vld [vmem:[#allocation5 + $0x408] sm:$0xff]
    %v449 = vld [vmem:[#allocation5 + $0x410] sm:$0xff]
    %v450 = vld [vmem:[#allocation5 + $0x418] sm:$0xff]
    %v451 = vld [vmem:[#allocation5 + $0x420] sm:$0xff]
    %v452 = vld [vmem:[#allocation5 + $0x428] sm:$0xff]
    %v453 = vld [vmem:[#allocation5 + $0x430] sm:$0xff]
    %v454 = vld [vmem:[#allocation5 + $0x438] sm:$0xff]
    %v455 = vld [vmem:[#allocation5 + $0x440] sm:$0xff]
    %v456 = vld [vmem:[#allocation5 + $0x448] sm:$0xff]
    %v457 = vld [vmem:[#allocation5 + $0x450] sm:$0xff]
    %v458 = vld [vmem:[#allocation5 + $0x458] sm:$0xff]
    %v459 = vld [vmem:[#allocation5 + $0x460] sm:$0xff]
    %v460 = vld [vmem:[#allocation5 + $0x468] sm:$0xff]
    %v461 = vld [vmem:[#allocation5 + $0x470] sm:$0xff]
    %v462 = vld [vmem:[#allocation5 + $0x478] sm:$0xff]
    %v463 = vld [vmem:[#allocation5 + $0x480] sm:$0xff]
    %v464 = vld [vmem:[#allocation5 + $0x488] sm:$0xff]
    %v465 = vld [vmem:[#allocation5 + $0x490] sm:$0xff]
    %v466 = vld [vmem:[#allocation5 + $0x498] sm:$0xff]
    %v467 = vld [vmem:[#allocation5 + $0x4a0] sm:$0xff]
    %v468 = vld [vmem:[#allocation5 + $0x4a8] sm:$0xff]
    %v469 = vld [vmem:[#allocation5 + $0x4b0] sm:$0xff]
    %v470 = vld [vmem:[#allocation5 + $0x4b8] sm:$0xff]
    %v471 = vld [vmem:[#allocation5 + $0x4c0] sm:$0xff]
    %v472 = vld [vmem:[#allocation5 + $0x4c8] sm:$0xff]
    %v473 = vld [vmem:[#allocation5 + $0x4d0] sm:$0xff]
    %v474 = vld [vmem:[#allocation5 + $0x4d8] sm:$0xff]
    %v475 = vld [vmem:[#allocation5 + $0x4e0] sm:$0xff]
    %v476 = vld [vmem:[#allocation5 + $0x4e8] sm:$0xff]
    %v477 = vld [vmem:[#allocation5 + $0x4f0] sm:$0xff]
    %v478 = vld [vmem:[#allocation5 + $0x4f8] sm:$0xff]
    %v479 = vld [vmem:[#allocation5 + $0x500] sm:$0xff]
    %v480 = vld [vmem:[#allocation5 + $0x508] sm:$0xff]
    %v481 = vld [vmem:[#allocation5 + $0x510] sm:$0xff]
    %v482 = vld [vmem:[#allocation5 + $0x518] sm:$0xff]
    %v483 = vld [vmem:[#allocation5 + $0x520] sm:$0xff]
    %v484 = vld [vmem:[#allocation5 + $0x528] sm:$0xff]
    %v485 = vld [vmem:[#allocation5 + $0x530] sm:$0xff]
    %v486 = vld [vmem:[#allocation5 + $0x538] sm:$0xff]
    %v487 = vld [vmem:[#allocation5 + $0x540] sm:$0xff]
    %v488 = vld [vmem:[#allocation5 + $0x548] sm:$0xff]
    %v489 = vld [vmem:[#allocation5 + $0x550] sm:$0xff]
    %v490 = vld [vmem:[#allocation5 + $0x558] sm:$0xff]
    %v491 = vld [vmem:[#allocation5 + $0x560] sm:$0xff]
    %v492 = vld [vmem:[#allocation5 + $0x568] sm:$0xff]
    %v493 = vld [vmem:[#allocation5 + $0x570] sm:$0xff]
    %v494 = vld [vmem:[#allocation5 + $0x578] sm:$0xff]
    %v495 = vld [vmem:[#allocation5 + $0x580] sm:$0xff]
    %v496 = vld [vmem:[#allocation5 + $0x588] sm:$0xff]
    %v497 = vld [vmem:[#allocation5 + $0x590] sm:$0xff]
    %v498 = vld [vmem:[#allocation5 + $0x598] sm:$0xff]
    %v499 = vld [vmem:[#allocation5 + $0x5a0] sm:$0xff]
    %v500 = vld [vmem:[#allocation5 + $0x5a8] sm:$0xff]
    %v501 = vld [vmem:[#allocation5 + $0x5b0] sm:$0xff]
    %v502 = vld [vmem:[#allocation5 + $0x5b8] sm:$0xff]
    %v503 = vld [vmem:[#allocation5 + $0x5c0] sm:$0xff]
    %v504 = vld [vmem:[#allocation5 + $0x5c8] sm:$0xff]
    %v505 = vld [vmem:[#allocation5 + $0x5d0] sm:$0xff]
    %v506 = vld [vmem:[#allocation5 + $0x5d8] sm:$0xff]
    %v507 = vld [vmem:[#allocation5 + $0x5e0] sm:$0xff]
    %v508 = vld [vmem:[#allocation5 + $0x5e8] sm:$0xff]
    %v509 = vld [vmem:[#allocation5 + $0x5f0] sm:$0xff]
    %v510 = vld [vmem:[#allocation5 + $0x5f8] sm:$0xff]
    %v511 = vld [vmem:[#allocation5 + $0x600] sm:$0xff]
    %v512 = vld [vmem:[#allocation5 + $0x608] sm:$0xff]
    %v513 = vld [vmem:[#allocation5 + $0x610] sm:$0xff]
    %v514 = vld [vmem:[#allocation5 + $0x618] sm:$0xff]
    %v515 = vld [vmem:[#allocation5 + $0x620] sm:$0xff]
    %v516 = vld [vmem:[#allocation5 + $0x628] sm:$0xff]
    %v517 = vld [vmem:[#allocation5 + $0x630] sm:$0xff]
    %v518 = vld [vmem:[#allocation5 + $0x638] sm:$0xff]
    %v519 = vld [vmem:[#allocation5 + $0x640] sm:$0xff]
    %v520 = vld [vmem:[#allocation5 + $0x648] sm:$0xff]
    %v521 = vld [vmem:[#allocation5 + $0x650] sm:$0xff]
    %v522 = vld [vmem:[#allocation5 + $0x658] sm:$0xff]
    %v523 = vld [vmem:[#allocation5 + $0x660] sm:$0xff]
    %v524 = vld [vmem:[#allocation5 + $0x668] sm:$0xff]
    %v525 = vld [vmem:[#allocation5 + $0x670] sm:$0xff]
    %v526 = vld [vmem:[#allocation5 + $0x678] sm:$0xff]
    %v527 = vld [vmem:[#allocation5 + $0x680] sm:$0xff]
    %v528 = vld [vmem:[#allocation5 + $0x688] sm:$0xff]
    %v529 = vld [vmem:[#allocation5 + $0x690] sm:$0xff]
    %v530 = vld [vmem:[#allocation5 + $0x698] sm:$0xff]
    %v531 = vld [vmem:[#allocation5 + $0x6a0] sm:$0xff]
    %v532 = vld [vmem:[#allocation5 + $0x6a8] sm:$0xff]
    %v533 = vld [vmem:[#allocation5 + $0x6b0] sm:$0xff]
    %v534 = vld [vmem:[#allocation5 + $0x6b8] sm:$0xff]
    %v535 = vld [vmem:[#allocation5 + $0x6c0] sm:$0xff]
    %v536 = vld [vmem:[#allocation5 + $0x6c8] sm:$0xff]
    %v537 = vld [vmem:[#allocation5 + $0x6d0] sm:$0xff]
    %v538 = vld [vmem:[#allocation5 + $0x6d8] sm:$0xff]
    %v539 = vld [vmem:[#allocation5 + $0x6e0] sm:$0xff]
    %v540 = vld [vmem:[#allocation5 + $0x6e8] sm:$0xff]
    %v541 = vld [vmem:[#allocation5 + $0x6f0] sm:$0xff]
    %v542 = vld [vmem:[#allocation5 + $0x6f8] sm:$0xff]
    %v543 = vld [vmem:[#allocation5 + $0x700] sm:$0xff]
    %v544 = vld [vmem:[#allocation5 + $0x708] sm:$0xff]
    %v545 = vld [vmem:[#allocation5 + $0x710] sm:$0xff]
    %v546 = vld [vmem:[#allocation5 + $0x718] sm:$0xff]
    %v547 = vld [vmem:[#allocation5 + $0x720] sm:$0xff]
    %v548 = vld [vmem:[#allocation5 + $0x728] sm:$0xff]
    %v549 = vld [vmem:[#allocation5 + $0x730] sm:$0xff]
    %v550 = vld [vmem:[#allocation5 + $0x738] sm:$0xff]
    %v551 = vld [vmem:[#allocation5 + $0x740] sm:$0xff]
    %v552 = vld [vmem:[#allocation5 + $0x748] sm:$0xff]
    %v553 = vld [vmem:[#allocation5 + $0x750] sm:$0xff]
    %v554 = vld [vmem:[#allocation5 + $0x758] sm:$0xff]
    %v555 = vld [vmem:[#allocation5 + $0x760] sm:$0xff]
    %v556 = vld [vmem:[#allocation5 + $0x768] sm:$0xff]
    %v557 = vld [vmem:[#allocation5 + $0x770] sm:$0xff]
    %v558 = vld [vmem:[#allocation5 + $0x778] sm:$0xff]
    %v559 = vld [vmem:[#allocation5 + $0x780] sm:$0xff]
    %v560 = vld [vmem:[#allocation5 + $0x788] sm:$0xff]
    %v561 = vld [vmem:[#allocation5 + $0x790] sm:$0xff]
    %v562 = vld [vmem:[#allocation5 + $0x798] sm:$0xff]
    %v563 = vld [vmem:[#allocation5 + $0x7a0] sm:$0xff]
    %v564 = vld [vmem:[#allocation5 + $0x7a8] sm:$0xff]
    %v565 = vld [vmem:[#allocation5 + $0x7b0] sm:$0xff]
    %v566 = vld [vmem:[#allocation5 + $0x7b8] sm:$0xff]
    %v567 = vld [vmem:[#allocation5 + $0x7c0] sm:$0xff]
    %v568 = vld [vmem:[#allocation5 + $0x7c8] sm:$0xff]
    %v569 = vld [vmem:[#allocation5 + $0x7d0] sm:$0xff]
    %v570 = vld [vmem:[#allocation5 + $0x7d8] sm:$0xff]
    %v571 = vld [vmem:[#allocation5 + $0x7e0] sm:$0xff]
    %v572 = vld [vmem:[#allocation5 + $0x7e8] sm:$0xff]
    %v573 = vld [vmem:[#allocation5 + $0x7f0] sm:$0xff]
    %v574 = vld [vmem:[#allocation5 + $0x7f8] sm:$0xff]
    %v575 = vld [vmem:[#allocation5 + $0x800] sm:$0xff]
    %v576 = vld [vmem:[#allocation5 + $0x808] sm:$0xff]
    %v577 = vld [vmem:[#allocation5 + $0x810] sm:$0xff]
    %v578 = vld [vmem:[#allocation5 + $0x818] sm:$0xff]
    %v579 = vld [vmem:[#allocation5 + $0x820] sm:$0xff]
    %v580 = vld [vmem:[#allocation5 + $0x828] sm:$0xff]
    %v581 = vld [vmem:[#allocation5 + $0x830] sm:$0xff]
    %v582 = vld [vmem:[#allocation5 + $0x838] sm:$0xff]
    %v583 = vld [vmem:[#allocation5 + $0x840] sm:$0xff]
    %v584 = vld [vmem:[#allocation5 + $0x848] sm:$0xff]
    %v585 = vld [vmem:[#allocation5 + $0x850] sm:$0xff]
    %v586 = vld [vmem:[#allocation5 + $0x858] sm:$0xff]
    %v587 = vld [vmem:[#allocation5 + $0x860] sm:$0xff]
    %v588 = vld [vmem:[#allocation5 + $0x868] sm:$0xff]
    %v589 = vld [vmem:[#allocation5 + $0x870] sm:$0xff]
    %v590 = vld [vmem:[#allocation5 + $0x878] sm:$0xff]
    %v591 = vld [vmem:[#allocation5 + $0x880] sm:$0xff]
    %v592 = vld [vmem:[#allocation5 + $0x888] sm:$0xff]
    %v593 = vld [vmem:[#allocation5 + $0x890] sm:$0xff]
    %v594 = vld [vmem:[#allocation5 + $0x898] sm:$0xff]
    %v595 = vld [vmem:[#allocation5 + $0x8a0] sm:$0xff]
    %v596 = vld [vmem:[#allocation5 + $0x8a8] sm:$0xff]
    %v597 = vld [vmem:[#allocation5 + $0x8b0] sm:$0xff]
    %v598 = vld [vmem:[#allocation5 + $0x8b8] sm:$0xff]
    %v599 = vld [vmem:[#allocation5 + $0x8c0] sm:$0xff]
    %v600 = vld [vmem:[#allocation5 + $0x8c8] sm:$0xff]
    %v601 = vld [vmem:[#allocation5 + $0x8d0] sm:$0xff]
    %v602 = vld [vmem:[#allocation5 + $0x8d8] sm:$0xff]
    %v603 = vld [vmem:[#allocation5 + $0x8e0] sm:$0xff]
    %v604 = vld [vmem:[#allocation5 + $0x8e8] sm:$0xff]
    %v605 = vld [vmem:[#allocation5 + $0x8f0] sm:$0xff]
    %v606 = vld [vmem:[#allocation5 + $0x8f8] sm:$0xff]
    %v607 = vld [vmem:[#allocation5 + $0x900] sm:$0xff]
    %v608 = vld [vmem:[#allocation5 + $0x908] sm:$0xff]
    %v609 = vld [vmem:[#allocation5 + $0x910] sm:$0xff]
    %v610 = vld [vmem:[#allocation5 + $0x918] sm:$0xff]
    %v611 = vld [vmem:[#allocation5 + $0x920] sm:$0xff]
    %v612 = vld [vmem:[#allocation5 + $0x928] sm:$0xff]
    %v613 = vld [vmem:[#allocation5 + $0x930] sm:$0xff]
    %v614 = vld [vmem:[#allocation5 + $0x938] sm:$0xff]
    %v615 = vld [vmem:[#allocation5 + $0x940] sm:$0xff]
    %v616 = vld [vmem:[#allocation5 + $0x948] sm:$0xff]
    %v617 = vld [vmem:[#allocation5 + $0x950] sm:$0xff]
    %v618 = vld [vmem:[#allocation5 + $0x958] sm:$0xff]
    %v619 = vld [vmem:[#allocation5 + $0x960] sm:$0xff]
    %v620 = vld [vmem:[#allocation5 + $0x968] sm:$0xff]
    %v621 = vld [vmem:[#allocation5 + $0x970] sm:$0xff]
    %v622 = vld [vmem:[#allocation5 + $0x978] sm:$0xff]
    %v623 = vld [vmem:[#allocation5 + $0x980] sm:$0xff]
    %v624 = vld [vmem:[#allocation5 + $0x988] sm:$0xff]
    %v625 = vld [vmem:[#allocation5 + $0x990] sm:$0xff]
    %v626 = vld [vmem:[#allocation5 + $0x998] sm:$0xff]
    %v627 = vld [vmem:[#allocation5 + $0x9a0] sm:$0xff]
    %v628 = vld [vmem:[#allocation5 + $0x9a8] sm:$0xff]
    %v629 = vld [vmem:[#allocation5 + $0x9b0] sm:$0xff]
    %v630 = vld [vmem:[#allocation5 + $0x9b8] sm:$0xff]
    %v631 = vld [vmem:[#allocation5 + $0x9c0] sm:$0xff]
    %v632 = vld [vmem:[#allocation5 + $0x9c8] sm:$0xff]
    %v633 = vld [vmem:[#allocation5 + $0x9d0] sm:$0xff]
    %v634 = vld [vmem:[#allocation5 + $0x9d8] sm:$0xff]
    %v635 = vld [vmem:[#allocation5 + $0x9e0] sm:$0xff]
    %v636 = vld [vmem:[#allocation5 + $0x9e8] sm:$0xff]
    %v637 = vld [vmem:[#allocation5 + $0x9f0] sm:$0xff]
    %v638 = vld [vmem:[#allocation5 + $0x9f8] sm:$0xff]
    %v639 = vld [vmem:[#allocation5 + $0xa00] sm:$0xff]
    %v640 = vld [vmem:[#allocation5 + $0xa08] sm:$0xff]
    %v641 = vld [vmem:[#allocation5 + $0xa10] sm:$0xff]
    %v642 = vld [vmem:[#allocation5 + $0xa18] sm:$0xff]
    %v643 = vld [vmem:[#allocation5 + $0xa20] sm:$0xff]
    %v644 = vld [vmem:[#allocation5 + $0xa28] sm:$0xff]
    %v645 = vld [vmem:[#allocation5 + $0xa30] sm:$0xff]
    %v646 = vld [vmem:[#allocation5 + $0xa38] sm:$0xff]
    %v647 = vld [vmem:[#allocation5 + $0xa40] sm:$0xff]
    %v648 = vld [vmem:[#allocation5 + $0xa48] sm:$0xff]
    %v649 = vld [vmem:[#allocation5 + $0xa50] sm:$0xff]
    %v650 = vld [vmem:[#allocation5 + $0xa58] sm:$0xff]
    %v651 = vld [vmem:[#allocation5 + $0xa60] sm:$0xff]
    %v652 = vld [vmem:[#allocation5 + $0xa68] sm:$0xff]
    %v653 = vld [vmem:[#allocation5 + $0xa70] sm:$0xff]
    %v654 = vld [vmem:[#allocation5 + $0xa78] sm:$0xff]
    %v655 = vld [vmem:[#allocation5 + $0xa80] sm:$0xff]
    %v656 = vld [vmem:[#allocation5 + $0xa88] sm:$0xff]
    %v657 = vld [vmem:[#allocation5 + $0xa90] sm:$0xff]
    %v658 = vld [vmem:[#allocation5 + $0xa98] sm:$0xff]
    %v659 = vld [vmem:[#allocation5 + $0xaa0] sm:$0xff]
    %v660 = vld [vmem:[#allocation5 + $0xaa8] sm:$0xff]
    %v661 = vld [vmem:[#allocation5 + $0xab0] sm:$0xff]
    %v662 = vld [vmem:[#allocation5 + $0xab8] sm:$0xff]
    %v663 = vld [vmem:[#allocation5 + $0xac0] sm:$0xff]
    %v664 = vld [vmem:[#allocation5 + $0xac8] sm:$0xff]
    %v665 = vld [vmem:[#allocation5 + $0xad0] sm:$0xff]
    %v666 = vld [vmem:[#allocation5 + $0xad8] sm:$0xff]
    %v667 = vld [vmem:[#allocation5 + $0xae0] sm:$0xff]
    %v668 = vld [vmem:[#allocation5 + $0xae8] sm:$0xff]
    %v669 = vld [vmem:[#allocation5 + $0xaf0] sm:$0xff]
    %v670 = vld [vmem:[#allocation5 + $0xaf8] sm:$0xff]
    %v671 = vld [vmem:[#allocation5 + $0xb00] sm:$0xff]
    %v672 = vld [vmem:[#allocation5 + $0xb08] sm:$0xff]
    %v673 = vld [vmem:[#allocation5 + $0xb10] sm:$0xff]
    %v674 = vld [vmem:[#allocation5 + $0xb18] sm:$0xff]
    %v675 = vld [vmem:[#allocation5 + $0xb20] sm:$0xff]
    %v676 = vld [vmem:[#allocation5 + $0xb28] sm:$0xff]
    %v677 = vld [vmem:[#allocation5 + $0xb30] sm:$0xff]
    %v678 = vld [vmem:[#allocation5 + $0xb38] sm:$0xff]
    %v679 = vld [vmem:[#allocation5 + $0xb40] sm:$0xff]
    %v680 = vld [vmem:[#allocation5 + $0xb48] sm:$0xff]
    %v681 = vld [vmem:[#allocation5 + $0xb50] sm:$0xff]
    %v682 = vld [vmem:[#allocation5 + $0xb58] sm:$0xff]
    %v683 = vld [vmem:[#allocation5 + $0xb60] sm:$0xff]
    %v684 = vld [vmem:[#allocation5 + $0xb68] sm:$0xff]
    %v685 = vld [vmem:[#allocation5 + $0xb70] sm:$0xff]
    %v686 = vld [vmem:[#allocation5 + $0xb78] sm:$0xff]
    %v687 = vld [vmem:[#allocation5 + $0xb80] sm:$0xff]
    %v688 = vld [vmem:[#allocation5 + $0xb88] sm:$0xff]
    %v689 = vld [vmem:[#allocation5 + $0xb90] sm:$0xff]
    %v690 = vld [vmem:[#allocation5 + $0xb98] sm:$0xff]
    %v691 = vld [vmem:[#allocation5 + $0xba0] sm:$0xff]
    %v692 = vld [vmem:[#allocation5 + $0xba8] sm:$0xff]
    %v693 = vld [vmem:[#allocation5 + $0xbb0] sm:$0xff]
    %v694 = vld [vmem:[#allocation5 + $0xbb8] sm:$0xff]
    %v695 = vld [vmem:[#allocation5 + $0xbc0] sm:$0xff]
    %v696 = vld [vmem:[#allocation5 + $0xbc8] sm:$0xff]
    %v697 = vld [vmem:[#allocation5 + $0xbd0] sm:$0xff]
    %v698 = vld [vmem:[#allocation5 + $0xbd8] sm:$0xff]
    %v699 = vld [vmem:[#allocation5 + $0xbe0] sm:$0xff]
    %v700 = vld [vmem:[#allocation5 + $0xbe8] sm:$0xff]
    %v701 = vld [vmem:[#allocation5 + $0xbf0] sm:$0xff]
    %v702 = vld [vmem:[#allocation5 + $0xbf8] sm:$0xff]
    %v703 = vld [vmem:[#allocation5 + $0xc00] sm:$0xff]
    %v704 = vld [vmem:[#allocation5 + $0xc08] sm:$0xff]
    %v705 = vld [vmem:[#allocation5 + $0xc10] sm:$0xff]
    %v706 = vld [vmem:[#allocation5 + $0xc18] sm:$0xff]
    %v707 = vld [vmem:[#allocation5 + $0xc20] sm:$0xff]
    %v708 = vld [vmem:[#allocation5 + $0xc28] sm:$0xff]
    %v709 = vld [vmem:[#allocation5 + $0xc30] sm:$0xff]
    %v710 = vld [vmem:[#allocation5 + $0xc38] sm:$0xff]
    %v711 = vld [vmem:[#allocation5 + $0xc40] sm:$0xff]
    %v712 = vld [vmem:[#allocation5 + $0xc48] sm:$0xff]
    %v713 = vld [vmem:[#allocation5 + $0xc50] sm:$0xff]
    %v714 = vld [vmem:[#allocation5 + $0xc58] sm:$0xff]
    %v715 = vld [vmem:[#allocation5 + $0xc60] sm:$0xff]
    %v716 = vld [vmem:[#allocation5 + $0xc68] sm:$0xff]
    %v717 = vld [vmem:[#allocation5 + $0xc70] sm:$0xff]
    %v718 = vld [vmem:[#allocation5 + $0xc78] sm:$0xff]
    %v719 = vld [vmem:[#allocation5 + $0xc80] sm:$0xff]
    %v720 = vld [vmem:[#allocation5 + $0xc88] sm:$0xff]
    %v721 = vld [vmem:[#allocation5 + $0xc90] sm:$0xff]
    %v722 = vld [vmem:[#allocation5 + $0xc98] sm:$0xff]
    %v723 = vld [vmem:[#allocation5 + $0xca0] sm:$0xff]
    %v724 = vld [vmem:[#allocation5 + $0xca8] sm:$0xff]
    %v725 = vld [vmem:[#allocation5 + $0xcb0] sm:$0xff]
    %v726 = vld [vmem:[#allocation5 + $0xcb8] sm:$0xff]
    %v727 = vld [vmem:[#allocation5 + $0xcc0] sm:$0xff]
    %v728 = vld [vmem:[#allocation5 + $0xcc8] sm:$0xff]
    %v729 = vld [vmem:[#allocation5 + $0xcd0] sm:$0xff]
    %v730 = vld [vmem:[#allocation5 + $0xcd8] sm:$0xff]
    %v731 = vld [vmem:[#allocation5 + $0xce0] sm:$0xff]
    %v732 = vld [vmem:[#allocation5 + $0xce8] sm:$0xff]
    %v733 = vld [vmem:[#allocation5 + $0xcf0] sm:$0xff]
    %v734 = vld [vmem:[#allocation5 + $0xcf8] sm:$0xff]
    %v735 = vld [vmem:[#allocation5 + $0xd00] sm:$0xff]
    %v736 = vld [vmem:[#allocation5 + $0xd08] sm:$0xff]
    %v737 = vld [vmem:[#allocation5 + $0xd10] sm:$0xff]
    %v738 = vld [vmem:[#allocation5 + $0xd18] sm:$0xff]
    %v739 = vld [vmem:[#allocation5 + $0xd20] sm:$0xff]
    %v740 = vld [vmem:[#allocation5 + $0xd28] sm:$0xff]
    %v741 = vld [vmem:[#allocation5 + $0xd30] sm:$0xff]
    %v742 = vld [vmem:[#allocation5 + $0xd38] sm:$0xff]
    %v743 = vld [vmem:[#allocation5 + $0xd40] sm:$0xff]
    %v744 = vld [vmem:[#allocation5 + $0xd48] sm:$0xff]
    %v745 = vld [vmem:[#allocation5 + $0xd50] sm:$0xff]
    %v746 = vld [vmem:[#allocation5 + $0xd58] sm:$0xff]
    %v747 = vld [vmem:[#allocation5 + $0xd60] sm:$0xff]
    %v748 = vld [vmem:[#allocation5 + $0xd68] sm:$0xff]
    %v749 = vld [vmem:[#allocation5 + $0xd70] sm:$0xff]
    %v750 = vld [vmem:[#allocation5 + $0xd78] sm:$0xff]
    %v751 = vld [vmem:[#allocation5 + $0xd80] sm:$0xff]
    %v752 = vld [vmem:[#allocation5 + $0xd88] sm:$0xff]
    %v753 = vld [vmem:[#allocation5 + $0xd90] sm:$0xff]
    %v754 = vld [vmem:[#allocation5 + $0xd98] sm:$0xff]
    %v755 = vld [vmem:[#allocation5 + $0xda0] sm:$0xff]
    %v756 = vld [vmem:[#allocation5 + $0xda8] sm:$0xff]
    %v757 = vld [vmem:[#allocation5 + $0xdb0] sm:$0xff]
    %v758 = vld [vmem:[#allocation5 + $0xdb8] sm:$0xff]
    %v759 = vld [vmem:[#allocation5 + $0xdc0] sm:$0xff]
    %v760 = vld [vmem:[#allocation5 + $0xdc8] sm:$0xff]
    %v761 = vld [vmem:[#allocation5 + $0xdd0] sm:$0xff]
    %v762 = vld [vmem:[#allocation5 + $0xdd8] sm:$0xff]
    %v763 = vld [vmem:[#allocation5 + $0xde0] sm:$0xff]
    %v764 = vld [vmem:[#allocation5 + $0xde8] sm:$0xff]
    %v765 = vld [vmem:[#allocation5 + $0xdf0] sm:$0xff]
    %v766 = vld [vmem:[#allocation5 + $0xdf8] sm:$0xff]
    %v767 = vld [vmem:[#allocation5 + $0xe00] sm:$0xff]
    %v768 = vld [vmem:[#allocation5 + $0xe08] sm:$0xff]
    %v769 = vld [vmem:[#allocation5 + $0xe10] sm:$0xff]
    %v770 = vld [vmem:[#allocation5 + $0xe18] sm:$0xff]
    %v771 = vld [vmem:[#allocation5 + $0xe20] sm:$0xff]
    %v772 = vld [vmem:[#allocation5 + $0xe28] sm:$0xff]
    %v773 = vld [vmem:[#allocation5 + $0xe30] sm:$0xff]
    %v774 = vld [vmem:[#allocation5 + $0xe38] sm:$0xff]
    %v775 = vld [vmem:[#allocation5 + $0xe40] sm:$0xff]
    %v776 = vld [vmem:[#allocation5 + $0xe48] sm:$0xff]
    %v777 = vld [vmem:[#allocation5 + $0xe50] sm:$0xff]
    %v778 = vld [vmem:[#allocation5 + $0xe58] sm:$0xff]
    %v779 = vld [vmem:[#allocation5 + $0xe60] sm:$0xff]
    %v780 = vld [vmem:[#allocation5 + $0xe68] sm:$0xff]
    %v781 = vld [vmem:[#allocation5 + $0xe70] sm:$0xff]
    %v782 = vld [vmem:[#allocation5 + $0xe78] sm:$0xff]
    %v783 = vld [vmem:[#allocation5 + $0xe80] sm:$0xff]
    %v784 = vld [vmem:[#allocation5 + $0xe88] sm:$0xff]
    %v785 = vld [vmem:[#allocation5 + $0xe90] sm:$0xff]
    %v786 = vld [vmem:[#allocation5 + $0xe98] sm:$0xff]
    %v787 = vld [vmem:[#allocation5 + $0xea0] sm:$0xff]
    %v788 = vld [vmem:[#allocation5 + $0xea8] sm:$0xff]
    %v789 = vld [vmem:[#allocation5 + $0xeb0] sm:$0xff]
    %v790 = vld [vmem:[#allocation5 + $0xeb8] sm:$0xff]
    %v791 = vld [vmem:[#allocation5 + $0xec0] sm:$0xff]
    %v792 = vld [vmem:[#allocation5 + $0xec8] sm:$0xff]
    %v793 = vld [vmem:[#allocation5 + $0xed0] sm:$0xff]
    %v794 = vld [vmem:[#allocation5 + $0xed8] sm:$0xff]
    %v795 = vld [vmem:[#allocation5 + $0xee0] sm:$0xff]
    %v796 = vld [vmem:[#allocation5 + $0xee8] sm:$0xff]
    %v797 = vld [vmem:[#allocation5 + $0xef0] sm:$0xff]
    %v798 = vld [vmem:[#allocation5 + $0xef8] sm:$0xff]
    %v799 = vld [vmem:[#allocation5 + $0xf00] sm:$0xff]
    %v800 = vld [vmem:[#allocation5 + $0xf08] sm:$0xff]
    %v801 = vld [vmem:[#allocation5 + $0xf10] sm:$0xff]
    %v802 = vld [vmem:[#allocation5 + $0xf18] sm:$0xff]
    %v803 = vld [vmem:[#allocation5 + $0xf20] sm:$0xff]
    %v804 = vld [vmem:[#allocation5 + $0xf28] sm:$0xff]
    %v805 = vld [vmem:[#allocation5 + $0xf30] sm:$0xff]
    %v806 = vld [vmem:[#allocation5 + $0xf38] sm:$0xff]
    %v807 = vld [vmem:[#allocation5 + $0xf40] sm:$0xff]
    %v808 = vld [vmem:[#allocation5 + $0xf48] sm:$0xff]
    %v809 = vld [vmem:[#allocation5 + $0xf50] sm:$0xff]
    %v810 = vld [vmem:[#allocation5 + $0xf58] sm:$0xff]
    %v811 = vld [vmem:[#allocation5 + $0xf60] sm:$0xff]
    %v812 = vld [vmem:[#allocation5 + $0xf68] sm:$0xff]
    %v813 = vld [vmem:[#allocation5 + $0xf70] sm:$0xff]
    %v814 = vld [vmem:[#allocation5 + $0xf78] sm:$0xff]
    %v815 = vld [vmem:[#allocation5 + $0xf80] sm:$0xff]
    %v816 = vld [vmem:[#allocation5 + $0xf88] sm:$0xff]
    %v817 = vld [vmem:[#allocation5 + $0xf90] sm:$0xff]
    %v818 = vld [vmem:[#allocation5 + $0xf98] sm:$0xff]
    %v819 = vld [vmem:[#allocation5 + $0xfa0] sm:$0xff]
    %v820 = vld [vmem:[#allocation5 + $0xfa8] sm:$0xff]
    %v821 = vld [vmem:[#allocation5 + $0xfb0] sm:$0xff]
    %v822 = vld [vmem:[#allocation5 + $0xfb8] sm:$0xff]
    %v823 = vld [vmem:[#allocation5 + $0xfc0] sm:$0xff]
    %v824 = vld [vmem:[#allocation5 + $0xfc8] sm:$0xff]
    %v825 = vld [vmem:[#allocation5 + $0xfd0] sm:$0xff]
    %v826 = vld [vmem:[#allocation5 + $0xfd8] sm:$0xff]
    %v827 = vld [vmem:[#allocation5 + $0xfe0] sm:$0xff]
    %v828 = vld [vmem:[#allocation5 + $0xfe8] sm:$0xff]
    %v829 = vld [vmem:[#allocation5 + $0xff0] sm:$0xff]
    %v830 = vld [vmem:[#allocation5 + $0xff8] sm:$0xff]
    %v831 = vld [vmem:[#allocation5 + $0x1000] sm:$0xff]
    %v832 = vld [vmem:[#allocation5 + $0x1008] sm:$0xff]
    %v833 = vld [vmem:[#allocation5 + $0x1010] sm:$0xff]
    %v834 = vld [vmem:[#allocation5 + $0x1018] sm:$0xff]
    %v835 = vld [vmem:[#allocation5 + $0x1020] sm:$0xff]
    %v836 = vld [vmem:[#allocation5 + $0x1028] sm:$0xff]
    %v837 = vld [vmem:[#allocation5 + $0x1030] sm:$0xff]
    %v838 = vld [vmem:[#allocation5 + $0x1038] sm:$0xff]
    %v839 = vld [vmem:[#allocation5 + $0x1040] sm:$0xff]
    %v840 = vld [vmem:[#allocation5 + $0x1048] sm:$0xff]
    %v841 = vld [vmem:[#allocation5 + $0x1050] sm:$0xff]
    %v842 = vld [vmem:[#allocation5 + $0x1058] sm:$0xff]
    %v843 = vld [vmem:[#allocation5 + $0x1060] sm:$0xff]
    %v844 = vld [vmem:[#allocation5 + $0x1068] sm:$0xff]
    %v845 = vld [vmem:[#allocation5 + $0x1070] sm:$0xff]
    %v846 = vld [vmem:[#allocation5 + $0x1078] sm:$0xff]
    %v847 = vld [vmem:[#allocation5 + $0x1080] sm:$0xff]
    %v848 = vld [vmem:[#allocation5 + $0x1088] sm:$0xff]
    %v849 = vld [vmem:[#allocation5 + $0x1090] sm:$0xff]
    %v850 = vld [vmem:[#allocation5 + $0x1098] sm:$0xff]
    %v851 = vld [vmem:[#allocation5 + $0x10a0] sm:$0xff]
    %v852 = vld [vmem:[#allocation5 + $0x10a8] sm:$0xff]
    %v853 = vld [vmem:[#allocation5 + $0x10b0] sm:$0xff]
    %v854 = vld [vmem:[#allocation5 + $0x10b8] sm:$0xff]
    %v855 = vld [vmem:[#allocation5 + $0x10c0] sm:$0xff]
    %v856 = vld [vmem:[#allocation5 + $0x10c8] sm:$0xff]
    %v857 = vld [vmem:[#allocation5 + $0x10d0] sm:$0xff]
    %v858 = vld [vmem:[#allocation5 + $0x10d8] sm:$0xff]
    %v859 = vld [vmem:[#allocation5 + $0x10e0] sm:$0xff]
    %v860 = vld [vmem:[#allocation5 + $0x10e8] sm:$0xff]
    %v861 = vld [vmem:[#allocation5 + $0x10f0] sm:$0xff]
    %v862 = vld [vmem:[#allocation5 + $0x10f8] sm:$0xff]
    %v863 = vld [vmem:[#allocation5 + $0x1100] sm:$0xff]
    %v864 = vld [vmem:[#allocation5 + $0x1108] sm:$0xff]
    %v865 = vld [vmem:[#allocation5 + $0x1110] sm:$0xff]
    %v866 = vld [vmem:[#allocation5 + $0x1118] sm:$0xff]
    %v867 = vld [vmem:[#allocation5 + $0x1120] sm:$0xff]
    %v868 = vld [vmem:[#allocation5 + $0x1128] sm:$0xff]
    %v869 = vld [vmem:[#allocation5 + $0x1130] sm:$0xff]
    %v870 = vld [vmem:[#allocation5 + $0x1138] sm:$0xff]
    %v871 = vld [vmem:[#allocation5 + $0x1140] sm:$0xff]
    %v872 = vld [vmem:[#allocation5 + $0x1148] sm:$0xff]
    %v873 = vld [vmem:[#allocation5 + $0x1150] sm:$0xff]
    %v874 = vld [vmem:[#allocation5 + $0x1158] sm:$0xff]
    %v875 = vld [vmem:[#allocation5 + $0x1160] sm:$0xff]
    %v876 = vld [vmem:[#allocation5 + $0x1168] sm:$0xff]
    %v877 = vld [vmem:[#allocation5 + $0x1170] sm:$0xff]
    %v878 = vld [vmem:[#allocation5 + $0x1178] sm:$0xff]
    %v879 = vld [vmem:[#allocation5 + $0x1180] sm:$0xff]
    %v880 = vld [vmem:[#allocation5 + $0x1188] sm:$0xff]
    %v881 = vld [vmem:[#allocation5 + $0x1190] sm:$0xff]
    %v882 = vld [vmem:[#allocation5 + $0x1198] sm:$0xff]
    %v883 = vld [vmem:[#allocation5 + $0x11a0] sm:$0xff]
    %v884 = vld [vmem:[#allocation5 + $0x11a8] sm:$0xff]
    %v885 = vld [vmem:[#allocation5 + $0x11b0] sm:$0xff]
    %v886 = vld [vmem:[#allocation5 + $0x11b8] sm:$0xff]
    %v887 = vld [vmem:[#allocation5 + $0x11c0] sm:$0xff]
    %v888 = vld [vmem:[#allocation5 + $0x11c8] sm:$0xff]
    %v889 = vld [vmem:[#allocation5 + $0x11d0] sm:$0xff]
    %v890 = vld [vmem:[#allocation5 + $0x11d8] sm:$0xff]
    %v891 = vld [vmem:[#allocation5 + $0x11e0] sm:$0xff]
    %v892 = vld [vmem:[#allocation5 + $0x11e8] sm:$0xff]
    %v893 = vld [vmem:[#allocation5 + $0x11f0] sm:$0xff]
    %v894 = vld [vmem:[#allocation5 + $0x11f8] sm:$0xff]
    %v895 = vld [vmem:[#allocation5 + $0x1200] sm:$0xff]
    %v896 = vld [vmem:[#allocation5 + $0x1208] sm:$0xff]
    %v897 = vld [vmem:[#allocation5 + $0x1210] sm:$0xff]
    %v898 = vld [vmem:[#allocation5 + $0x1218] sm:$0xff]
    %v899 = vld [vmem:[#allocation5 + $0x1220] sm:$0xff]
    %v900 = vld [vmem:[#allocation5 + $0x1228] sm:$0xff]
    %v901 = vld [vmem:[#allocation5 + $0x1230] sm:$0xff]
    %v902 = vld [vmem:[#allocation5 + $0x1238] sm:$0xff]
    %v903 = vld [vmem:[#allocation5 + $0x1240] sm:$0xff]
    %v904 = vld [vmem:[#allocation5 + $0x1248] sm:$0xff]
    %v905 = vld [vmem:[#allocation5 + $0x1250] sm:$0xff]
    %v906 = vld [vmem:[#allocation5 + $0x1258] sm:$0xff]
    %v907 = vld [vmem:[#allocation5 + $0x1260] sm:$0xff]
    %v908 = vld [vmem:[#allocation5 + $0x1268] sm:$0xff]
    %v909 = vld [vmem:[#allocation5 + $0x1270] sm:$0xff]
    %v910 = vld [vmem:[#allocation5 + $0x1278] sm:$0xff]
    %v911 = vld [vmem:[#allocation5 + $0x1280] sm:$0xff]
    %v912 = vld [vmem:[#allocation5 + $0x1288] sm:$0xff]
    %v913 = vld [vmem:[#allocation5 + $0x1290] sm:$0xff]
    %v914 = vld [vmem:[#allocation5 + $0x1298] sm:$0xff]
    %v915 = vld [vmem:[#allocation5 + $0x12a0] sm:$0xff]
    %v916 = vld [vmem:[#allocation5 + $0x12a8] sm:$0xff]
    %v917 = vld [vmem:[#allocation5 + $0x12b0] sm:$0xff]
    %v918 = vld [vmem:[#allocation5 + $0x12b8] sm:$0xff]
    %v919 = vld [vmem:[#allocation5 + $0x12c0] sm:$0xff]
    %v920 = vld [vmem:[#allocation5 + $0x12c8] sm:$0xff]
    %v921 = vld [vmem:[#allocation5 + $0x12d0] sm:$0xff]
    %v922 = vld [vmem:[#allocation5 + $0x12d8] sm:$0xff]
    %v923 = vld [vmem:[#allocation5 + $0x12e0] sm:$0xff]
    %v924 = vld [vmem:[#allocation5 + $0x12e8] sm:$0xff]
    %v925 = vld [vmem:[#allocation5 + $0x12f0] sm:$0xff]
    %v926 = vld [vmem:[#allocation5 + $0x12f8] sm:$0xff]
    %v927 = vld [vmem:[#allocation5 + $0x1300] sm:$0xff]
    %v928 = vld [vmem:[#allocation5 + $0x1308] sm:$0xff]
    %v929 = vld [vmem:[#allocation5 + $0x1310] sm:$0xff]
    %v930 = vld [vmem:[#allocation5 + $0x1318] sm:$0xff]
    %v931 = vld [vmem:[#allocation5 + $0x1320] sm:$0xff]
    %v932 = vld [vmem:[#allocation5 + $0x1328] sm:$0xff]
    %v933 = vld [vmem:[#allocation5 + $0x1330] sm:$0xff]
    %v934 = vld [vmem:[#allocation5 + $0x1338] sm:$0xff]
    %v935 = vld [vmem:[#allocation5 + $0x1340] sm:$0xff]
    %v936 = vld [vmem:[#allocation5 + $0x1348] sm:$0xff]
    %v937 = vld [vmem:[#allocation5 + $0x1350] sm:$0xff]
    %v938 = vld [vmem:[#allocation5 + $0x1358] sm:$0xff]
    %v939 = vld [vmem:[#allocation5 + $0x1360] sm:$0xff]
    %v940 = vld [vmem:[#allocation5 + $0x1368] sm:$0xff]
    %v941 = vld [vmem:[#allocation5 + $0x1370] sm:$0xff]
    %v942 = vld [vmem:[#allocation5 + $0x1378] sm:$0xff]
    %v943 = vld [vmem:[#allocation5 + $0x1380] sm:$0xff]
    %v944 = vld [vmem:[#allocation5 + $0x1388] sm:$0xff]
    %v945 = vld [vmem:[#allocation5 + $0x1390] sm:$0xff]
    %v946 = vld [vmem:[#allocation5 + $0x1398] sm:$0xff]
    %v947 = vld [vmem:[#allocation5 + $0x13a0] sm:$0xff]
    %v948 = vld [vmem:[#allocation5 + $0x13a8] sm:$0xff]
    %v949 = vld [vmem:[#allocation5 + $0x13b0] sm:$0xff]
    %v950 = vld [vmem:[#allocation5 + $0x13b8] sm:$0xff]
    %v951 = vld [vmem:[#allocation5 + $0x13c0] sm:$0xff]
    %v952 = vld [vmem:[#allocation5 + $0x13c8] sm:$0xff]
    %v953 = vld [vmem:[#allocation5 + $0x13d0] sm:$0xff]
    %v954 = vld [vmem:[#allocation5 + $0x13d8] sm:$0xff]
    %v955 = vld [vmem:[#allocation5 + $0x13e0] sm:$0xff]
    %v956 = vld [vmem:[#allocation5 + $0x13e8] sm:$0xff]
    %v957 = vld [vmem:[#allocation5 + $0x13f0] sm:$0xff]
    %v958 = vld [vmem:[#allocation5 + $0x13f8] sm:$0xff]
    %v959 = vld [vmem:[#allocation5 + $0x1400] sm:$0xff]
    %v960 = vld [vmem:[#allocation5 + $0x1408] sm:$0xff]
    %v961 = vld [vmem:[#allocation5 + $0x1410] sm:$0xff]
    %v962 = vld [vmem:[#allocation5 + $0x1418] sm:$0xff]
    %v963 = vld [vmem:[#allocation5 + $0x1420] sm:$0xff]
    %v964 = vld [vmem:[#allocation5 + $0x1428] sm:$0xff]
    %v965 = vld [vmem:[#allocation5 + $0x1430] sm:$0xff]
    %v966 = vld [vmem:[#allocation5 + $0x1438] sm:$0xff]
    %v967 = vld [vmem:[#allocation5 + $0x1440] sm:$0xff]
    %v968 = vld [vmem:[#allocation5 + $0x1448] sm:$0xff]
    %v969 = vld [vmem:[#allocation5 + $0x1450] sm:$0xff]
    %v970 = vld [vmem:[#allocation5 + $0x1458] sm:$0xff]
    %v971 = vld [vmem:[#allocation5 + $0x1460] sm:$0xff]
    %v972 = vld [vmem:[#allocation5 + $0x1468] sm:$0xff]
    %v973 = vld [vmem:[#allocation5 + $0x1470] sm:$0xff]
    %v974 = vld [vmem:[#allocation5 + $0x1478] sm:$0xff]
    %v975 = vld [vmem:[#allocation5 + $0x1480] sm:$0xff]
    %v976 = vld [vmem:[#allocation5 + $0x1488] sm:$0xff]
    %v977 = vld [vmem:[#allocation5 + $0x1490] sm:$0xff]
    %v978 = vld [vmem:[#allocation5 + $0x1498] sm:$0xff]
    %v979 = vld [vmem:[#allocation5 + $0x14a0] sm:$0xff]
    %v980 = vld [vmem:[#allocation5 + $0x14a8] sm:$0xff]
    %v981 = vld [vmem:[#allocation5 + $0x14b0] sm:$0xff]
    %v982 = vld [vmem:[#allocation5 + $0x14b8] sm:$0xff]
    %v983 = vld [vmem:[#allocation5 + $0x14c0] sm:$0xff]
    %v984 = vld [vmem:[#allocation5 + $0x14c8] sm:$0xff]
    %v985 = vld [vmem:[#allocation5 + $0x14d0] sm:$0xff]
    %v986 = vld [vmem:[#allocation5 + $0x14d8] sm:$0xff]
    %v987 = vld [vmem:[#allocation5 + $0x14e0] sm:$0xff]
    %v988 = vld [vmem:[#allocation5 + $0x14e8] sm:$0xff]
    %v989 = vld [vmem:[#allocation5 + $0x14f0] sm:$0xff]
    %v990 = vld [vmem:[#allocation5 + $0x14f8] sm:$0xff]
    %v991 = vld [vmem:[#allocation5 + $0x1500] sm:$0xff]
    %v992 = vld [vmem:[#allocation5 + $0x1508] sm:$0xff]
    %v993 = vld [vmem:[#allocation5 + $0x1510] sm:$0xff]
    %v994 = vld [vmem:[#allocation5 + $0x1518] sm:$0xff]
    %v995 = vld [vmem:[#allocation5 + $0x1520] sm:$0xff]
    %v996 = vld [vmem:[#allocation5 + $0x1528] sm:$0xff]
    %v997 = vld [vmem:[#allocation5 + $0x1530] sm:$0xff]
    %v998 = vld [vmem:[#allocation5 + $0x1538] sm:$0xff]
    %v999 = vld [vmem:[#allocation5 + $0x1540] sm:$0xff]
    %v1000 = vld [vmem:[#allocation5 + $0x1548] sm:$0xff]
    %v1001 = vld [vmem:[#allocation5 + $0x1550] sm:$0xff]
    %v1002 = vld [vmem:[#allocation5 + $0x1558] sm:$0xff]
    %v1003 = vld [vmem:[#allocation5 + $0x1560] sm:$0xff]
    %v1004 = vld [vmem:[#allocation5 + $0x1568] sm:$0xff]
    %v1005 = vld [vmem:[#allocation5 + $0x1570] sm:$0xff]
    %v1006 = vld [vmem:[#allocation5 + $0x1578] sm:$0xff]
    %v1007 = vld [vmem:[#allocation5 + $0x1580] sm:$0xff]
    %v1008 = vld [vmem:[#allocation5 + $0x1588] sm:$0xff]
    %v1009 = vld [vmem:[#allocation5 + $0x1590] sm:$0xff]
    %v1010 = vld [vmem:[#allocation5 + $0x1598] sm:$0xff]
    %v1011 = vld [vmem:[#allocation5 + $0x15a0] sm:$0xff]
    %v1012 = vld [vmem:[#allocation5 + $0x15a8] sm:$0xff]
    %v1013 = vld [vmem:[#allocation5 + $0x15b0] sm:$0xff]
    %v1014 = vld [vmem:[#allocation5 + $0x15b8] sm:$0xff]
    %v1015 = vld [vmem:[#allocation5 + $0x15c0] sm:$0xff]
    %v1016 = vld [vmem:[#allocation5 + $0x15c8] sm:$0xff]
    %v1017 = vld [vmem:[#allocation5 + $0x15d0] sm:$0xff]
    %v1018 = vld [vmem:[#allocation5 + $0x15d8] sm:$0xff]
    %v1019 = vld [vmem:[#allocation5 + $0x15e0] sm:$0xff]
    %v1020 = vld [vmem:[#allocation5 + $0x15e8] sm:$0xff]
    %v1021 = vld [vmem:[#allocation5 + $0x15f0] sm:$0xff]
    %v1022 = vld [vmem:[#allocation5 + $0x15f8] sm:$0xff]
    %v1023 = vld [vmem:[#allocation5 + $0x1600] sm:$0xff]
    %v1024 = vld [vmem:[#allocation5 + $0x1608] sm:$0xff]
    %v1025 = vld [vmem:[#allocation5 + $0x1610] sm:$0xff]
    %v1026 = vld [vmem:[#allocation5 + $0x1618] sm:$0xff]
    %v1027 = vld [vmem:[#allocation5 + $0x1620] sm:$0xff]
    %v1028 = vld [vmem:[#allocation5 + $0x1628] sm:$0xff]
    %v1029 = vld [vmem:[#allocation5 + $0x1630] sm:$0xff]
    %v1030 = vld [vmem:[#allocation5 + $0x1638] sm:$0xff]
    %v1031 = vld [vmem:[#allocation5 + $0x1640] sm:$0xff]
    %v1032 = vld [vmem:[#allocation5 + $0x1648] sm:$0xff]
    %v1033 = vld [vmem:[#allocation5 + $0x1650] sm:$0xff]
    %v1034 = vld [vmem:[#allocation5 + $0x1658] sm:$0xff]
    %v1035 = vld [vmem:[#allocation5 + $0x1660] sm:$0xff]
    %v1036 = vld [vmem:[#allocation5 + $0x1668] sm:$0xff]
    %v1037 = vld [vmem:[#allocation5 + $0x1670] sm:$0xff]
    %v1038 = vld [vmem:[#allocation5 + $0x1678] sm:$0xff]
    %v1039 = vld [vmem:[#allocation5 + $0x1680] sm:$0xff]
    %v1040 = vld [vmem:[#allocation5 + $0x1688] sm:$0xff]
    %v1041 = vld [vmem:[#allocation5 + $0x1690] sm:$0xff]
    %v1042 = vld [vmem:[#allocation5 + $0x1698] sm:$0xff]
    %v1043 = vld [vmem:[#allocation5 + $0x16a0] sm:$0xff]
    %v1044 = vld [vmem:[#allocation5 + $0x16a8] sm:$0xff]
    %v1045 = vld [vmem:[#allocation5 + $0x16b0] sm:$0xff]
    %v1046 = vld [vmem:[#allocation5 + $0x16b8] sm:$0xff]
    %v1047 = vld [vmem:[#allocation5 + $0x16c0] sm:$0xff]
    %v1048 = vld [vmem:[#allocation5 + $0x16c8] sm:$0xff]
    %v1049 = vld [vmem:[#allocation5 + $0x16d0] sm:$0xff]
    %v1050 = vld [vmem:[#allocation5 + $0x16d8] sm:$0xff]
    %v1051 = vld [vmem:[#allocation5 + $0x16e0] sm:$0xff]
    %v1052 = vld [vmem:[#allocation5 + $0x16e8] sm:$0xff]
    %v1053 = vld [vmem:[#allocation5 + $0x16f0] sm:$0xff]
    %v1054 = vld [vmem:[#allocation5 + $0x16f8] sm:$0xff]
    %v1055 = vld [vmem:[#allocation5 + $0x1700] sm:$0xff]
    %v1056 = vld [vmem:[#allocation5 + $0x1708] sm:$0xff]
    %v1057 = vld [vmem:[#allocation5 + $0x1710] sm:$0xff]
    %v1058 = vld [vmem:[#allocation5 + $0x1718] sm:$0xff]
    %v1059 = vld [vmem:[#allocation5 + $0x1720] sm:$0xff]
    %v1060 = vld [vmem:[#allocation5 + $0x1728] sm:$0xff]
    %v1061 = vld [vmem:[#allocation5 + $0x1730] sm:$0xff]
    %v1062 = vld [vmem:[#allocation5 + $0x1738] sm:$0xff]
    %v1063 = vld [vmem:[#allocation5 + $0x1740] sm:$0xff]
    %v1064 = vld [vmem:[#allocation5 + $0x1748] sm:$0xff]
    %v1065 = vld [vmem:[#allocation5 + $0x1750] sm:$0xff]
    %v1066 = vld [vmem:[#allocation5 + $0x1758] sm:$0xff]
    %v1067 = vld [vmem:[#allocation5 + $0x1760] sm:$0xff]
    %v1068 = vld [vmem:[#allocation5 + $0x1768] sm:$0xff]
    %v1069 = vld [vmem:[#allocation5 + $0x1770] sm:$0xff]
    %v1070 = vld [vmem:[#allocation5 + $0x1778] sm:$0xff]
    %v1071 = vld [vmem:[#allocation5 + $0x1780] sm:$0xff]
    %v1072 = vld [vmem:[#allocation5 + $0x1788] sm:$0xff]
    %v1073 = vld [vmem:[#allocation5 + $0x1790] sm:$0xff]
    %v1074 = vld [vmem:[#allocation5 + $0x1798] sm:$0xff]
    %v1075 = vld [vmem:[#allocation5 + $0x17a0] sm:$0xff]
    %v1076 = vld [vmem:[#allocation5 + $0x17a8] sm:$0xff]
    %v1077 = vld [vmem:[#allocation5 + $0x17b0] sm:$0xff]
    %v1078 = vld [vmem:[#allocation5 + $0x17b8] sm:$0xff]
    %v1079 = vld [vmem:[#allocation5 + $0x17c0] sm:$0xff]
    %v1080 = vld [vmem:[#allocation5 + $0x17c8] sm:$0xff]
    %v1081 = vld [vmem:[#allocation5 + $0x17d0] sm:$0xff]
    %v1082 = vld [vmem:[#allocation5 + $0x17d8] sm:$0xff]
    %v1083 = vld [vmem:[#allocation5 + $0x17e0] sm:$0xff]
    %v1084 = vld [vmem:[#allocation5 + $0x17e8] sm:$0xff]
    %v1085 = vld [vmem:[#allocation5 + $0x17f0] sm:$0xff]
    %v1086 = vld [vmem:[#allocation5 + $0x17f8] sm:$0xff]
    %1087 = vmatpush.msra.mxu0 %v439
    %1088 = vmatpush.msra.mxu0 %v431
    %1089 = vmatpush.msra.mxu0 %v423
    %1090 = vmatpush.msra.mxu0 %v415
    %1091 = vmatpush.msra.mxu0 %v407
    %1092 = vmatpush.msra.mxu0 %v399
    %1093 = vmatpush.msra.mxu0 %v391
    %1094 = vmatpush.msra.mxu0 %v383
    %1095 = vmatpush.msra.mxu0 %v375
    %1096 = vmatpush.msra.mxu0 %v367
    %1097 = vmatpush.msra.mxu0 %v359
    %1098 = vmatpush.msra.mxu0 %v351
    %1099 = vmatpush.msra.mxu0 %v343
    %1100 = vmatpush.msra.mxu0 %v335
    %1101 = vmatpush.msra.mxu0 %v327
    %1102 = vmatpush.msra.mxu0 %v319
    %1103 = vmatmul.f32.gmra.mxu0 %v292
    %v1104 = vpop.f32.mrf.mxu0
    %v1105 = vadd.f32 0.0, %v1104
    %1106 = vdwg.mxu0
    %1107 = vmatpush.msra.mxu0 %v567
    %1108 = vmatpush.msra.mxu0 %v559
    %1109 = vmatpush.msra.mxu0 %v551
    %1110 = vmatpush.msra.mxu0 %v543
    %1111 = vmatpush.msra.mxu0 %v535
    %1112 = vmatpush.msra.mxu0 %v527
    %1113 = vmatpush.msra.mxu0 %v519
    %1114 = vmatpush.msra.mxu0 %v511
    %1115 = vmatpush.msra.mxu0 %v503
    %1116 = vmatpush.msra.mxu0 %v495
    %1117 = vmatpush.msra.mxu0 %v487
    %1118 = vmatpush.msra.mxu0 %v479
    %1119 = vmatpush.msra.mxu0 %v471
    %1120 = vmatpush.msra.mxu0 %v463
    %1121 = vmatpush.msra.mxu0 %v455
    %1122 = vmatpush.msra.mxu0 %v447
    %1123 = vmatmul.f32.gmra.mxu0 %v293
    %v1124 = vpop.f32.mrf.mxu0
    %v1125 = vadd.f32 %v1105, %v1124
    %1126 = vdwg.mxu0
    %1127 = vmatpush.msra.mxu0 %v695
    %1128 = vmatpush.msra.mxu0 %v687
    %1129 = vmatpush.msra.mxu0 %v679
    %1130 = vmatpush.msra.mxu0 %v671
    %1131 = vmatpush.msra.mxu0 %v663
    %1132 = vmatpush.msra.mxu0 %v655
    %1133 = vmatpush.msra.mxu0 %v647
    %1134 = vmatpush.msra.mxu0 %v639
    %1135 = vmatpush.msra.mxu0 %v631
    %1136 = vmatpush.msra.mxu0 %v623
    %1137 = vmatpush.msra.mxu0 %v615
    %1138 = vmatpush.msra.mxu0 %v607
    %1139 = vmatpush.msra.mxu0 %v599
    %1140 = vmatpush.msra.mxu0 %v591
    %1141 = vmatpush.msra.mxu0 %v583
    %1142 = vmatpush.msra.mxu0 %v575
    %1143 = vmatmul.f32.gmra.mxu0 %v294
    %v1144 = vpop.f32.mrf.mxu0
    %v1145 = vadd.f32 %v1125, %v1144
    %1146 = vdwg.mxu0
    %1147 = vmatpush.msra.mxu0 %v823
    %1148 = vmatpush.msra.mxu0 %v815
    %1149 = vmatpush.msra.mxu0 %v807
    %1150 = vmatpush.msra.mxu0 %v799
    %1151 = vmatpush.msra.mxu0 %v791
    %1152 = vmatpush.msra.mxu0 %v783
    %1153 = vmatpush.msra.mxu0 %v775
    %1154 = vmatpush.msra.mxu0 %v767
    %1155 = vmatpush.msra.mxu0 %v759
    %1156 = vmatpush.msra.mxu0 %v751
    %1157 = vmatpush.msra.mxu0 %v743
    %1158 = vmatpush.msra.mxu0 %v735
    %1159 = vmatpush.msra.mxu0 %v727
    %1160 = vmatpush.msra.mxu0 %v719
    %1161 = vmatpush.msra.mxu0 %v711
    %1162 = vmatpush.msra.mxu0 %v703
    %1163 = vmatmul.f32.gmra.mxu0 %v295
    %v1164 = vpop.f32.mrf.mxu0
    %v1165 = vadd.f32 %v1145, %v1164
    %1166 = vdwg.mxu0
    %1167 = vmatpush.msra.mxu0 %v951
    %1168 = vmatpush.msra.mxu0 %v943
    %1169 = vmatpush.msra.mxu0 %v935
    %1170 = vmatpush.msra.mxu0 %v927
    %1171 = vmatpush.msra.mxu0 %v919
    %1172 = vmatpush.msra.mxu0 %v911
    %1173 = vmatpush.msra.mxu0 %v903
    %1174 = vmatpush.msra.mxu0 %v895
    %1175 = vmatpush.msra.mxu0 %v887
    %1176 = vmatpush.msra.mxu0 %v879
    %1177 = vmatpush.msra.mxu0 %v871
    %1178 = vmatpush.msra.mxu0 %v863
    %1179 = vmatpush.msra.mxu0 %v855
    %1180 = vmatpush.msra.mxu0 %v847
    %1181 = vmatpush.msra.mxu0 %v839
    %1182 = vmatpush.msra.mxu0 %v831
    %1183 = vmatmul.f32.gmra.mxu0 %v296
    %v1184 = vpop.f32.mrf.mxu0
    %v1185 = vadd.f32 %v1165, %v1184
    %1186 = vdwg.mxu0
    %1187 = vmatpush.msra.mxu0 %v1079
    %1188 = vmatpush.msra.mxu0 %v1071
    %1189 = vmatpush.msra.mxu0 %v1063
    %1190 = vmatpush.msra.mxu0 %v1055
    %1191 = vmatpush.msra.mxu0 %v1047
    %1192 = vmatpush.msra.mxu0 %v1039
    %1193 = vmatpush.msra.mxu0 %v1031
    %1194 = vmatpush.msra.mxu0 %v1023
    %1195 = vmatpush.msra.mxu0 %v1015
    %1196 = vmatpush.msra.mxu0 %v1007
    %1197 = vmatpush.msra.mxu0 %v999
    %1198 = vmatpush.msra.mxu0 %v991
    %1199 = vmatpush.msra.mxu0 %v983
    %1200 = vmatpush.msra.mxu0 %v975
    %1201 = vmatpush.msra.mxu0 %v967
    %1202 = vmatpush.msra.mxu0 %v959
    %1203 = vmatmul.f32.gmra.mxu0 %v297
    %v1204 = vpop.f32.mrf.mxu0
    %v1205 = vadd.f32 %v1185, %v1204
    %1206 = vdwg.mxu0
    %1207 = vmatpush.msra.mxu0 %v440
    %1208 = vmatpush.msra.mxu0 %v432
    %1209 = vmatpush.msra.mxu0 %v424
    %1210 = vmatpush.msra.mxu0 %v416
    %1211 = vmatpush.msra.mxu0 %v408
    %1212 = vmatpush.msra.mxu0 %v400
    %1213 = vmatpush.msra.mxu0 %v392
    %1214 = vmatpush.msra.mxu0 %v384
    %1215 = vmatpush.msra.mxu0 %v376
    %1216 = vmatpush.msra.mxu0 %v368
    %1217 = vmatpush.msra.mxu0 %v360
    %1218 = vmatpush.msra.mxu0 %v352
    %1219 = vmatpush.msra.mxu0 %v344
    %1220 = vmatpush.msra.mxu0 %v336
    %1221 = vmatpush.msra.mxu0 %v328
    %1222 = vmatpush.msra.mxu0 %v320
    %1223 = vmatmul.f32.gmra.mxu0 %v292
    %v1224 = vpop.f32.mrf.mxu0
    %v1225 = vadd.f32 0.0, %v1224
    %1226 = vdwg.mxu0
    %1227 = vmatpush.msra.mxu0 %v568
    %1228 = vmatpush.msra.mxu0 %v560
    %1229 = vmatpush.msra.mxu0 %v552
    %1230 = vmatpush.msra.mxu0 %v544
    %1231 = vmatpush.msra.mxu0 %v536
    %1232 = vmatpush.msra.mxu0 %v528
    %1233 = vmatpush.msra.mxu0 %v520
    %1234 = vmatpush.msra.mxu0 %v512
    %1235 = vmatpush.msra.mxu0 %v504
    %1236 = vmatpush.msra.mxu0 %v496
    %1237 = vmatpush.msra.mxu0 %v488
    %1238 = vmatpush.msra.mxu0 %v480
    %1239 = vmatpush.msra.mxu0 %v472
    %1240 = vmatpush.msra.mxu0 %v464
    %1241 = vmatpush.msra.mxu0 %v456
    %1242 = vmatpush.msra.mxu0 %v448
    %1243 = vmatmul.f32.gmra.mxu0 %v293
    %v1244 = vpop.f32.mrf.mxu0
    %v1245 = vadd.f32 %v1225, %v1244
    %1246 = vdwg.mxu0
    %1247 = vmatpush.msra.mxu0 %v696
    %1248 = vmatpush.msra.mxu0 %v688
    %1249 = vmatpush.msra.mxu0 %v680
    %1250 = vmatpush.msra.mxu0 %v672
    %1251 = vmatpush.msra.mxu0 %v664
    %1252 = vmatpush.msra.mxu0 %v656
    %1253 = vmatpush.msra.mxu0 %v648
    %1254 = vmatpush.msra.mxu0 %v640
    %1255 = vmatpush.msra.mxu0 %v632
    %1256 = vmatpush.msra.mxu0 %v624
    %1257 = vmatpush.msra.mxu0 %v616
    %1258 = vmatpush.msra.mxu0 %v608
    %1259 = vmatpush.msra.mxu0 %v600
    %1260 = vmatpush.msra.mxu0 %v592
    %1261 = vmatpush.msra.mxu0 %v584
    %1262 = vmatpush.msra.mxu0 %v576
    %1263 = vmatmul.f32.gmra.mxu0 %v294
    %v1264 = vpop.f32.mrf.mxu0
    %v1265 = vadd.f32 %v1245, %v1264
    %1266 = vdwg.mxu0
    %1267 = vmatpush.msra.mxu0 %v824
    %1268 = vmatpush.msra.mxu0 %v816
    %1269 = vmatpush.msra.mxu0 %v808
    %1270 = vmatpush.msra.mxu0 %v800
    %1271 = vmatpush.msra.mxu0 %v792
    %1272 = vmatpush.msra.mxu0 %v784
    %1273 = vmatpush.msra.mxu0 %v776
    %1274 = vmatpush.msra.mxu0 %v768
    %1275 = vmatpush.msra.mxu0 %v760
    %1276 = vmatpush.msra.mxu0 %v752
    %1277 = vmatpush.msra.mxu0 %v744
    %1278 = vmatpush.msra.mxu0 %v736
    %1279 = vmatpush.msra.mxu0 %v728
    %1280 = vmatpush.msra.mxu0 %v720
    %1281 = vmatpush.msra.mxu0 %v712
    %1282 = vmatpush.msra.mxu0 %v704
    %1283 = vmatmul.f32.gmra.mxu0 %v295
    %v1284 = vpop.f32.mrf.mxu0
    %v1285 = vadd.f32 %v1265, %v1284
    %1286 = vdwg.mxu0
    %1287 = vmatpush.msra.mxu0 %v952
    %1288 = vmatpush.msra.mxu0 %v944
    %1289 = vmatpush.msra.mxu0 %v936
    %1290 = vmatpush.msra.mxu0 %v928
    %1291 = vmatpush.msra.mxu0 %v920
    %1292 = vmatpush.msra.mxu0 %v912
    %1293 = vmatpush.msra.mxu0 %v904
    %1294 = vmatpush.msra.mxu0 %v896
    %1295 = vmatpush.msra.mxu0 %v888
    %1296 = vmatpush.msra.mxu0 %v880
    %1297 = vmatpush.msra.mxu0 %v872
    %1298 = vmatpush.msra.mxu0 %v864
    %1299 = vmatpush.msra.mxu0 %v856
    %1300 = vmatpush.msra.mxu0 %v848
    %1301 = vmatpush.msra.mxu0 %v840
    %1302 = vmatpush.msra.mxu0 %v832
    %1303 = vmatmul.f32.gmra.mxu0 %v296
    %v1304 = vpop.f32.mrf.mxu0
    %v1305 = vadd.f32 %v1285, %v1304
    %1306 = vdwg.mxu0
    %1307 = vmatpush.msra.mxu0 %v1080
    %1308 = vmatpush.msra.mxu0 %v1072
    %1309 = vmatpush.msra.mxu0 %v1064
    %1310 = vmatpush.msra.mxu0 %v1056
    %1311 = vmatpush.msra.mxu0 %v1048
    %1312 = vmatpush.msra.mxu0 %v1040
    %1313 = vmatpush.msra.mxu0 %v1032
    %1314 = vmatpush.msra.mxu0 %v1024
    %1315 = vmatpush.msra.mxu0 %v1016
    %1316 = vmatpush.msra.mxu0 %v1008
    %1317 = vmatpush.msra.mxu0 %v1000
    %1318 = vmatpush.msra.mxu0 %v992
    %1319 = vmatpush.msra.mxu0 %v984
    %1320 = vmatpush.msra.mxu0 %v976
    %1321 = vmatpush.msra.mxu0 %v968
    %1322 = vmatpush.msra.mxu0 %v960
    %1323 = vmatmul.f32.gmra.mxu0 %v297
    %v1324 = vpop.f32.mrf.mxu0
    %v1325 = vadd.f32 %v1305, %v1324
    %1326 = vdwg.mxu0
    %1327 = vmatpush.msra.mxu0 %v441
    %1328 = vmatpush.msra.mxu0 %v433
    %1329 = vmatpush.msra.mxu0 %v425
    %1330 = vmatpush.msra.mxu0 %v417
    %1331 = vmatpush.msra.mxu0 %v409
    %1332 = vmatpush.msra.mxu0 %v401
    %1333 = vmatpush.msra.mxu0 %v393
    %1334 = vmatpush.msra.mxu0 %v385
    %1335 = vmatpush.msra.mxu0 %v377
    %1336 = vmatpush.msra.mxu0 %v369
    %1337 = vmatpush.msra.mxu0 %v361
    %1338 = vmatpush.msra.mxu0 %v353
    %1339 = vmatpush.msra.mxu0 %v345
    %1340 = vmatpush.msra.mxu0 %v337
    %1341 = vmatpush.msra.mxu0 %v329
    %1342 = vmatpush.msra.mxu0 %v321
    %1343 = vmatmul.f32.gmra.mxu0 %v292
    %v1344 = vpop.f32.mrf.mxu0
    %v1345 = vadd.f32 0.0, %v1344
    %1346 = vdwg.mxu0
    %1347 = vmatpush.msra.mxu0 %v569
    %1348 = vmatpush.msra.mxu0 %v561
    %1349 = vmatpush.msra.mxu0 %v553
    %1350 = vmatpush.msra.mxu0 %v545
    %1351 = vmatpush.msra.mxu0 %v537
    %1352 = vmatpush.msra.mxu0 %v529
    %1353 = vmatpush.msra.mxu0 %v521
    %1354 = vmatpush.msra.mxu0 %v513
    %1355 = vmatpush.msra.mxu0 %v505
    %1356 = vmatpush.msra.mxu0 %v497
    %1357 = vmatpush.msra.mxu0 %v489
    %1358 = vmatpush.msra.mxu0 %v481
    %1359 = vmatpush.msra.mxu0 %v473
    %1360 = vmatpush.msra.mxu0 %v465
    %1361 = vmatpush.msra.mxu0 %v457
    %1362 = vmatpush.msra.mxu0 %v449
    %1363 = vmatmul.f32.gmra.mxu0 %v293
    %v1364 = vpop.f32.mrf.mxu0
    %v1365 = vadd.f32 %v1345, %v1364
    %1366 = vdwg.mxu0
    %1367 = vmatpush.msra.mxu0 %v697
    %1368 = vmatpush.msra.mxu0 %v689
    %1369 = vmatpush.msra.mxu0 %v681
    %1370 = vmatpush.msra.mxu0 %v673
    %1371 = vmatpush.msra.mxu0 %v665
    %1372 = vmatpush.msra.mxu0 %v657
    %1373 = vmatpush.msra.mxu0 %v649
    %1374 = vmatpush.msra.mxu0 %v641
    %1375 = vmatpush.msra.mxu0 %v633
    %1376 = vmatpush.msra.mxu0 %v625
    %1377 = vmatpush.msra.mxu0 %v617
    %1378 = vmatpush.msra.mxu0 %v609
    %1379 = vmatpush.msra.mxu0 %v601
    %1380 = vmatpush.msra.mxu0 %v593
    %1381 = vmatpush.msra.mxu0 %v585
    %1382 = vmatpush.msra.mxu0 %v577
    %1383 = vmatmul.f32.gmra.mxu0 %v294
    %v1384 = vpop.f32.mrf.mxu0
    %v1385 = vadd.f32 %v1365, %v1384
    %1386 = vdwg.mxu0
    %1387 = vmatpush.msra.mxu0 %v825
    %1388 = vmatpush.msra.mxu0 %v817
    %1389 = vmatpush.msra.mxu0 %v809
    %1390 = vmatpush.msra.mxu0 %v801
    %1391 = vmatpush.msra.mxu0 %v793
    %1392 = vmatpush.msra.mxu0 %v785
    %1393 = vmatpush.msra.mxu0 %v777
    %1394 = vmatpush.msra.mxu0 %v769
    %1395 = vmatpush.msra.mxu0 %v761
    %1396 = vmatpush.msra.mxu0 %v753
    %1397 = vmatpush.msra.mxu0 %v745
    %1398 = vmatpush.msra.mxu0 %v737
    %1399 = vmatpush.msra.mxu0 %v729
    %1400 = vmatpush.msra.mxu0 %v721
    %1401 = vmatpush.msra.mxu0 %v713
    %1402 = vmatpush.msra.mxu0 %v705
    %1403 = vmatmul.f32.gmra.mxu0 %v295
    %v1404 = vpop.f32.mrf.mxu0
    %v1405 = vadd.f32 %v1385, %v1404
    %1406 = vdwg.mxu0
    %1407 = vmatpush.msra.mxu0 %v953
    %1408 = vmatpush.msra.mxu0 %v945
    %1409 = vmatpush.msra.mxu0 %v937
    %1410 = vmatpush.msra.mxu0 %v929
    %1411 = vmatpush.msra.mxu0 %v921
    %1412 = vmatpush.msra.mxu0 %v913
    %1413 = vmatpush.msra.mxu0 %v905
    %1414 = vmatpush.msra.mxu0 %v897
    %1415 = vmatpush.msra.mxu0 %v889
    %1416 = vmatpush.msra.mxu0 %v881
    %1417 = vmatpush.msra.mxu0 %v873
    %1418 = vmatpush.msra.mxu0 %v865
    %1419 = vmatpush.msra.mxu0 %v857
    %1420 = vmatpush.msra.mxu0 %v849
    %1421 = vmatpush.msra.mxu0 %v841
    %1422 = vmatpush.msra.mxu0 %v833
    %1423 = vmatmul.f32.gmra.mxu0 %v296
    %v1424 = vpop.f32.mrf.mxu0
    %v1425 = vadd.f32 %v1405, %v1424
    %1426 = vdwg.mxu0
    %1427 = vmatpush.msra.mxu0 %v1081
    %1428 = vmatpush.msra.mxu0 %v1073
    %1429 = vmatpush.msra.mxu0 %v1065
    %1430 = vmatpush.msra.mxu0 %v1057
    %1431 = vmatpush.msra.mxu0 %v1049
    %1432 = vmatpush.msra.mxu0 %v1041
    %1433 = vmatpush.msra.mxu0 %v1033
    %1434 = vmatpush.msra.mxu0 %v1025
    %1435 = vmatpush.msra.mxu0 %v1017
    %1436 = vmatpush.msra.mxu0 %v1009
    %1437 = vmatpush.msra.mxu0 %v1001
    %1438 = vmatpush.msra.mxu0 %v993
    %1439 = vmatpush.msra.mxu0 %v985
    %1440 = vmatpush.msra.mxu0 %v977
    %1441 = vmatpush.msra.mxu0 %v969
    %1442 = vmatpush.msra.mxu0 %v961
    %1443 = vmatmul.f32.gmra.mxu0 %v297
    %v1444 = vpop.f32.mrf.mxu0
    %v1445 = vadd.f32 %v1425, %v1444
    %1446 = vdwg.mxu0
    %1447 = vmatpush.msra.mxu0 %v442
    %1448 = vmatpush.msra.mxu0 %v434
    %1449 = vmatpush.msra.mxu0 %v426
    %1450 = vmatpush.msra.mxu0 %v418
    %1451 = vmatpush.msra.mxu0 %v410
    %1452 = vmatpush.msra.mxu0 %v402
    %1453 = vmatpush.msra.mxu0 %v394
    %1454 = vmatpush.msra.mxu0 %v386
    %1455 = vmatpush.msra.mxu0 %v378
    %1456 = vmatpush.msra.mxu0 %v370
    %1457 = vmatpush.msra.mxu0 %v362
    %1458 = vmatpush.msra.mxu0 %v354
    %1459 = vmatpush.msra.mxu0 %v346
    %1460 = vmatpush.msra.mxu0 %v338
    %1461 = vmatpush.msra.mxu0 %v330
    %1462 = vmatpush.msra.mxu0 %v322
    %1463 = vmatmul.f32.gmra.mxu0 %v292
    %v1464 = vpop.f32.mrf.mxu0
    %v1465 = vadd.f32 0.0, %v1464
    %1466 = vdwg.mxu0
    %1467 = vmatpush.msra.mxu0 %v570
    %1468 = vmatpush.msra.mxu0 %v562
    %1469 = vmatpush.msra.mxu0 %v554
    %1470 = vmatpush.msra.mxu0 %v546
    %1471 = vmatpush.msra.mxu0 %v538
    %1472 = vmatpush.msra.mxu0 %v530
    %1473 = vmatpush.msra.mxu0 %v522
    %1474 = vmatpush.msra.mxu0 %v514
    %1475 = vmatpush.msra.mxu0 %v506
    %1476 = vmatpush.msra.mxu0 %v498
    %1477 = vmatpush.msra.mxu0 %v490
    %1478 = vmatpush.msra.mxu0 %v482
    %1479 = vmatpush.msra.mxu0 %v474
    %1480 = vmatpush.msra.mxu0 %v466
    %1481 = vmatpush.msra.mxu0 %v458
    %1482 = vmatpush.msra.mxu0 %v450
    %1483 = vmatmul.f32.gmra.mxu0 %v293
    %v1484 = vpop.f32.mrf.mxu0
    %v1485 = vadd.f32 %v1465, %v1484
    %1486 = vdwg.mxu0
    %1487 = vmatpush.msra.mxu0 %v698
    %1488 = vmatpush.msra.mxu0 %v690
    %1489 = vmatpush.msra.mxu0 %v682
    %1490 = vmatpush.msra.mxu0 %v674
    %1491 = vmatpush.msra.mxu0 %v666
    %1492 = vmatpush.msra.mxu0 %v658
    %1493 = vmatpush.msra.mxu0 %v650
    %1494 = vmatpush.msra.mxu0 %v642
    %1495 = vmatpush.msra.mxu0 %v634
    %1496 = vmatpush.msra.mxu0 %v626
    %1497 = vmatpush.msra.mxu0 %v618
    %1498 = vmatpush.msra.mxu0 %v610
    %1499 = vmatpush.msra.mxu0 %v602
    %1500 = vmatpush.msra.mxu0 %v594
    %1501 = vmatpush.msra.mxu0 %v586
    %1502 = vmatpush.msra.mxu0 %v578
    %1503 = vmatmul.f32.gmra.mxu0 %v294
    %v1504 = vpop.f32.mrf.mxu0
    %v1505 = vadd.f32 %v1485, %v1504
    %1506 = vdwg.mxu0
    %1507 = vmatpush.msra.mxu0 %v826
    %1508 = vmatpush.msra.mxu0 %v818
    %1509 = vmatpush.msra.mxu0 %v810
    %1510 = vmatpush.msra.mxu0 %v802
    %1511 = vmatpush.msra.mxu0 %v794
    %1512 = vmatpush.msra.mxu0 %v786
    %1513 = vmatpush.msra.mxu0 %v778
    %1514 = vmatpush.msra.mxu0 %v770
    %1515 = vmatpush.msra.mxu0 %v762
    %1516 = vmatpush.msra.mxu0 %v754
    %1517 = vmatpush.msra.mxu0 %v746
    %1518 = vmatpush.msra.mxu0 %v738
    %1519 = vmatpush.msra.mxu0 %v730
    %1520 = vmatpush.msra.mxu0 %v722
    %1521 = vmatpush.msra.mxu0 %v714
    %1522 = vmatpush.msra.mxu0 %v706
    %1523 = vmatmul.f32.gmra.mxu0 %v295
    %v1524 = vpop.f32.mrf.mxu0
    %v1525 = vadd.f32 %v1505, %v1524
    %1526 = vdwg.mxu0
    %1527 = vmatpush.msra.mxu0 %v954
    %1528 = vmatpush.msra.mxu0 %v946
    %1529 = vmatpush.msra.mxu0 %v938
    %1530 = vmatpush.msra.mxu0 %v930
    %1531 = vmatpush.msra.mxu0 %v922
    %1532 = vmatpush.msra.mxu0 %v914
    %1533 = vmatpush.msra.mxu0 %v906
    %1534 = vmatpush.msra.mxu0 %v898
    %1535 = vmatpush.msra.mxu0 %v890
    %1536 = vmatpush.msra.mxu0 %v882
    %1537 = vmatpush.msra.mxu0 %v874
    %1538 = vmatpush.msra.mxu0 %v866
    %1539 = vmatpush.msra.mxu0 %v858
    %1540 = vmatpush.msra.mxu0 %v850
    %1541 = vmatpush.msra.mxu0 %v842
    %1542 = vmatpush.msra.mxu0 %v834
    %1543 = vmatmul.f32.gmra.mxu0 %v296
    %v1544 = vpop.f32.mrf.mxu0
    %v1545 = vadd.f32 %v1525, %v1544
    %1546 = vdwg.mxu0
    %1547 = vmatpush.msra.mxu0 %v1082
    %1548 = vmatpush.msra.mxu0 %v1074
    %1549 = vmatpush.msra.mxu0 %v1066
    %1550 = vmatpush.msra.mxu0 %v1058
    %1551 = vmatpush.msra.mxu0 %v1050
    %1552 = vmatpush.msra.mxu0 %v1042
    %1553 = vmatpush.msra.mxu0 %v1034
    %1554 = vmatpush.msra.mxu0 %v1026
    %1555 = vmatpush.msra.mxu0 %v1018
    %1556 = vmatpush.msra.mxu0 %v1010
    %1557 = vmatpush.msra.mxu0 %v1002
    %1558 = vmatpush.msra.mxu0 %v994
    %1559 = vmatpush.msra.mxu0 %v986
    %1560 = vmatpush.msra.mxu0 %v978
    %1561 = vmatpush.msra.mxu0 %v970
    %1562 = vmatpush.msra.mxu0 %v962
    %1563 = vmatmul.f32.gmra.mxu0 %v297
    %v1564 = vpop.f32.mrf.mxu0
    %v1565 = vadd.f32 %v1545, %v1564
    %1566 = vdwg.mxu0
    %1567 = vmatpush.msra.mxu0 %v443
    %1568 = vmatpush.msra.mxu0 %v435
    %1569 = vmatpush.msra.mxu0 %v427
    %1570 = vmatpush.msra.mxu0 %v419
    %1571 = vmatpush.msra.mxu0 %v411
    %1572 = vmatpush.msra.mxu0 %v403
    %1573 = vmatpush.msra.mxu0 %v395
    %1574 = vmatpush.msra.mxu0 %v387
    %1575 = vmatpush.msra.mxu0 %v379
    %1576 = vmatpush.msra.mxu0 %v371
    %1577 = vmatpush.msra.mxu0 %v363
    %1578 = vmatpush.msra.mxu0 %v355
    %1579 = vmatpush.msra.mxu0 %v347
    %1580 = vmatpush.msra.mxu0 %v339
    %1581 = vmatpush.msra.mxu0 %v331
    %1582 = vmatpush.msra.mxu0 %v323
    %1583 = vmatmul.f32.gmra.mxu0 %v292
    %v1584 = vpop.f32.mrf.mxu0
    %v1585 = vadd.f32 0.0, %v1584
    %1586 = vdwg.mxu0
    %1587 = vmatpush.msra.mxu0 %v571
    %1588 = vmatpush.msra.mxu0 %v563
    %1589 = vmatpush.msra.mxu0 %v555
    %1590 = vmatpush.msra.mxu0 %v547
    %1591 = vmatpush.msra.mxu0 %v539
    %1592 = vmatpush.msra.mxu0 %v531
    %1593 = vmatpush.msra.mxu0 %v523
    %1594 = vmatpush.msra.mxu0 %v515
    %1595 = vmatpush.msra.mxu0 %v507
    %1596 = vmatpush.msra.mxu0 %v499
    %1597 = vmatpush.msra.mxu0 %v491
    %1598 = vmatpush.msra.mxu0 %v483
    %1599 = vmatpush.msra.mxu0 %v475
    %1600 = vmatpush.msra.mxu0 %v467
    %1601 = vmatpush.msra.mxu0 %v459
    %1602 = vmatpush.msra.mxu0 %v451
    %1603 = vmatmul.f32.gmra.mxu0 %v293
    %v1604 = vpop.f32.mrf.mxu0
    %v1605 = vadd.f32 %v1585, %v1604
    %1606 = vdwg.mxu0
    %1607 = vmatpush.msra.mxu0 %v699
    %1608 = vmatpush.msra.mxu0 %v691
    %1609 = vmatpush.msra.mxu0 %v683
    %1610 = vmatpush.msra.mxu0 %v675
    %1611 = vmatpush.msra.mxu0 %v667
    %1612 = vmatpush.msra.mxu0 %v659
    %1613 = vmatpush.msra.mxu0 %v651
    %1614 = vmatpush.msra.mxu0 %v643
    %1615 = vmatpush.msra.mxu0 %v635
    %1616 = vmatpush.msra.mxu0 %v627
    %1617 = vmatpush.msra.mxu0 %v619
    %1618 = vmatpush.msra.mxu0 %v611
    %1619 = vmatpush.msra.mxu0 %v603
    %1620 = vmatpush.msra.mxu0 %v595
    %1621 = vmatpush.msra.mxu0 %v587
    %1622 = vmatpush.msra.mxu0 %v579
    %1623 = vmatmul.f32.gmra.mxu0 %v294
    %v1624 = vpop.f32.mrf.mxu0
    %v1625 = vadd.f32 %v1605, %v1624
    %1626 = vdwg.mxu0
    %1627 = vmatpush.msra.mxu0 %v827
    %1628 = vmatpush.msra.mxu0 %v819
    %1629 = vmatpush.msra.mxu0 %v811
    %1630 = vmatpush.msra.mxu0 %v803
    %1631 = vmatpush.msra.mxu0 %v795
    %1632 = vmatpush.msra.mxu0 %v787
    %1633 = vmatpush.msra.mxu0 %v779
    %1634 = vmatpush.msra.mxu0 %v771
    %1635 = vmatpush.msra.mxu0 %v763
    %1636 = vmatpush.msra.mxu0 %v755
    %1637 = vmatpush.msra.mxu0 %v747
    %1638 = vmatpush.msra.mxu0 %v739
    %1639 = vmatpush.msra.mxu0 %v731
    %1640 = vmatpush.msra.mxu0 %v723
    %1641 = vmatpush.msra.mxu0 %v715
    %1642 = vmatpush.msra.mxu0 %v707
    %1643 = vmatmul.f32.gmra.mxu0 %v295
    %v1644 = vpop.f32.mrf.mxu0
    %v1645 = vadd.f32 %v1625, %v1644
    %1646 = vdwg.mxu0
    %1647 = vmatpush.msra.mxu0 %v955
    %1648 = vmatpush.msra.mxu0 %v947
    %1649 = vmatpush.msra.mxu0 %v939
    %1650 = vmatpush.msra.mxu0 %v931
    %1651 = vmatpush.msra.mxu0 %v923
    %1652 = vmatpush.msra.mxu0 %v915
    %1653 = vmatpush.msra.mxu0 %v907
    %1654 = vmatpush.msra.mxu0 %v899
    %1655 = vmatpush.msra.mxu0 %v891
    %1656 = vmatpush.msra.mxu0 %v883
    %1657 = vmatpush.msra.mxu0 %v875
    %1658 = vmatpush.msra.mxu0 %v867
    %1659 = vmatpush.msra.mxu0 %v859
    %1660 = vmatpush.msra.mxu0 %v851
    %1661 = vmatpush.msra.mxu0 %v843
    %1662 = vmatpush.msra.mxu0 %v835
    %1663 = vmatmul.f32.gmra.mxu0 %v296
    %v1664 = vpop.f32.mrf.mxu0
    %v1665 = vadd.f32 %v1645, %v1664
    %1666 = vdwg.mxu0
    %1667 = vmatpush.msra.mxu0 %v1083
    %1668 = vmatpush.msra.mxu0 %v1075
    %1669 = vmatpush.msra.mxu0 %v1067
    %1670 = vmatpush.msra.mxu0 %v1059
    %1671 = vmatpush.msra.mxu0 %v1051
    %1672 = vmatpush.msra.mxu0 %v1043
    %1673 = vmatpush.msra.mxu0 %v1035
    %1674 = vmatpush.msra.mxu0 %v1027
    %1675 = vmatpush.msra.mxu0 %v1019
    %1676 = vmatpush.msra.mxu0 %v1011
    %1677 = vmatpush.msra.mxu0 %v1003
    %1678 = vmatpush.msra.mxu0 %v995
    %1679 = vmatpush.msra.mxu0 %v987
    %1680 = vmatpush.msra.mxu0 %v979
    %1681 = vmatpush.msra.mxu0 %v971
    %1682 = vmatpush.msra.mxu0 %v963
    %1683 = vmatmul.f32.gmra.mxu0 %v297
    %v1684 = vpop.f32.mrf.mxu0
    %v1685 = vadd.f32 %v1665, %v1684
    %1686 = vdwg.mxu0
    %1687 = vmatpush.msra.mxu0 %v444
    %1688 = vmatpush.msra.mxu0 %v436
    %1689 = vmatpush.msra.mxu0 %v428
    %1690 = vmatpush.msra.mxu0 %v420
    %1691 = vmatpush.msra.mxu0 %v412
    %1692 = vmatpush.msra.mxu0 %v404
    %1693 = vmatpush.msra.mxu0 %v396
    %1694 = vmatpush.msra.mxu0 %v388
    %1695 = vmatpush.msra.mxu0 %v380
    %1696 = vmatpush.msra.mxu0 %v372
    %1697 = vmatpush.msra.mxu0 %v364
    %1698 = vmatpush.msra.mxu0 %v356
    %1699 = vmatpush.msra.mxu0 %v348
    %1700 = vmatpush.msra.mxu0 %v340
    %1701 = vmatpush.msra.mxu0 %v332
    %1702 = vmatpush.msra.mxu0 %v324
    %1703 = vmatmul.f32.gmra.mxu0 %v292
    %v1704 = vpop.f32.mrf.mxu0
    %v1705 = vadd.f32 0.0, %v1704
    %1706 = vdwg.mxu0
    %1707 = vmatpush.msra.mxu0 %v572
    %1708 = vmatpush.msra.mxu0 %v564
    %1709 = vmatpush.msra.mxu0 %v556
    %1710 = vmatpush.msra.mxu0 %v548
    %1711 = vmatpush.msra.mxu0 %v540
    %1712 = vmatpush.msra.mxu0 %v532
    %1713 = vmatpush.msra.mxu0 %v524
    %1714 = vmatpush.msra.mxu0 %v516
    %1715 = vmatpush.msra.mxu0 %v508
    %1716 = vmatpush.msra.mxu0 %v500
    %1717 = vmatpush.msra.mxu0 %v492
    %1718 = vmatpush.msra.mxu0 %v484
    %1719 = vmatpush.msra.mxu0 %v476
    %1720 = vmatpush.msra.mxu0 %v468
    %1721 = vmatpush.msra.mxu0 %v460
    %1722 = vmatpush.msra.mxu0 %v452
    %1723 = vmatmul.f32.gmra.mxu0 %v293
    %v1724 = vpop.f32.mrf.mxu0
    %v1725 = vadd.f32 %v1705, %v1724
    %1726 = vdwg.mxu0
    %1727 = vmatpush.msra.mxu0 %v700
    %1728 = vmatpush.msra.mxu0 %v692
    %1729 = vmatpush.msra.mxu0 %v684
    %1730 = vmatpush.msra.mxu0 %v676
    %1731 = vmatpush.msra.mxu0 %v668
    %1732 = vmatpush.msra.mxu0 %v660
    %1733 = vmatpush.msra.mxu0 %v652
    %1734 = vmatpush.msra.mxu0 %v644
    %1735 = vmatpush.msra.mxu0 %v636
    %1736 = vmatpush.msra.mxu0 %v628
    %1737 = vmatpush.msra.mxu0 %v620
    %1738 = vmatpush.msra.mxu0 %v612
    %1739 = vmatpush.msra.mxu0 %v604
    %1740 = vmatpush.msra.mxu0 %v596
    %1741 = vmatpush.msra.mxu0 %v588
    %1742 = vmatpush.msra.mxu0 %v580
    %1743 = vmatmul.f32.gmra.mxu0 %v294
    %v1744 = vpop.f32.mrf.mxu0
    %v1745 = vadd.f32 %v1725, %v1744
    %1746 = vdwg.mxu0
    %1747 = vmatpush.msra.mxu0 %v828
    %1748 = vmatpush.msra.mxu0 %v820
    %1749 = vmatpush.msra.mxu0 %v812
    %1750 = vmatpush.msra.mxu0 %v804
    %1751 = vmatpush.msra.mxu0 %v796
    %1752 = vmatpush.msra.mxu0 %v788
    %1753 = vmatpush.msra.mxu0 %v780
    %1754 = vmatpush.msra.mxu0 %v772
    %1755 = vmatpush.msra.mxu0 %v764
    %1756 = vmatpush.msra.mxu0 %v756
    %1757 = vmatpush.msra.mxu0 %v748
    %1758 = vmatpush.msra.mxu0 %v740
    %1759 = vmatpush.msra.mxu0 %v732
    %1760 = vmatpush.msra.mxu0 %v724
    %1761 = vmatpush.msra.mxu0 %v716
    %1762 = vmatpush.msra.mxu0 %v708
    %1763 = vmatmul.f32.gmra.mxu0 %v295
    %v1764 = vpop.f32.mrf.mxu0
    %v1765 = vadd.f32 %v1745, %v1764
    %1766 = vdwg.mxu0
    %1767 = vmatpush.msra.mxu0 %v956
    %1768 = vmatpush.msra.mxu0 %v948
    %1769 = vmatpush.msra.mxu0 %v940
    %1770 = vmatpush.msra.mxu0 %v932
    %1771 = vmatpush.msra.mxu0 %v924
    %1772 = vmatpush.msra.mxu0 %v916
    %1773 = vmatpush.msra.mxu0 %v908
    %1774 = vmatpush.msra.mxu0 %v900
    %1775 = vmatpush.msra.mxu0 %v892
    %1776 = vmatpush.msra.mxu0 %v884
    %1777 = vmatpush.msra.mxu0 %v876
    %1778 = vmatpush.msra.mxu0 %v868
    %1779 = vmatpush.msra.mxu0 %v860
    %1780 = vmatpush.msra.mxu0 %v852
    %1781 = vmatpush.msra.mxu0 %v844
    %1782 = vmatpush.msra.mxu0 %v836
    %1783 = vmatmul.f32.gmra.mxu0 %v296
    %v1784 = vpop.f32.mrf.mxu0
    %v1785 = vadd.f32 %v1765, %v1784
    %1786 = vdwg.mxu0
    %1787 = vmatpush.msra.mxu0 %v1084
    %1788 = vmatpush.msra.mxu0 %v1076
    %1789 = vmatpush.msra.mxu0 %v1068
    %1790 = vmatpush.msra.mxu0 %v1060
    %1791 = vmatpush.msra.mxu0 %v1052
    %1792 = vmatpush.msra.mxu0 %v1044
    %1793 = vmatpush.msra.mxu0 %v1036
    %1794 = vmatpush.msra.mxu0 %v1028
    %1795 = vmatpush.msra.mxu0 %v1020
    %1796 = vmatpush.msra.mxu0 %v1012
    %1797 = vmatpush.msra.mxu0 %v1004
    %1798 = vmatpush.msra.mxu0 %v996
    %1799 = vmatpush.msra.mxu0 %v988
    %1800 = vmatpush.msra.mxu0 %v980
    %1801 = vmatpush.msra.mxu0 %v972
    %1802 = vmatpush.msra.mxu0 %v964
    %1803 = vmatmul.f32.gmra.mxu0 %v297
    %v1804 = vpop.f32.mrf.mxu0
    %v1805 = vadd.f32 %v1785, %v1804
    %1806 = vdwg.mxu0
    %1807 = vmatpush.msra.mxu0 %v445
    %1808 = vmatpush.msra.mxu0 %v437
    %1809 = vmatpush.msra.mxu0 %v429
    %1810 = vmatpush.msra.mxu0 %v421
    %1811 = vmatpush.msra.mxu0 %v413
    %1812 = vmatpush.msra.mxu0 %v405
    %1813 = vmatpush.msra.mxu0 %v397
    %1814 = vmatpush.msra.mxu0 %v389
    %1815 = vmatpush.msra.mxu0 %v381
    %1816 = vmatpush.msra.mxu0 %v373
    %1817 = vmatpush.msra.mxu0 %v365
    %1818 = vmatpush.msra.mxu0 %v357
    %1819 = vmatpush.msra.mxu0 %v349
    %1820 = vmatpush.msra.mxu0 %v341
    %1821 = vmatpush.msra.mxu0 %v333
    %1822 = vmatpush.msra.mxu0 %v325
    %1823 = vmatmul.f32.gmra.mxu0 %v292
    %v1824 = vpop.f32.mrf.mxu0
    %v1825 = vadd.f32 0.0, %v1824
    %1826 = vdwg.mxu0
    %1827 = vmatpush.msra.mxu0 %v573
    %1828 = vmatpush.msra.mxu0 %v565
    %1829 = vmatpush.msra.mxu0 %v557
    %1830 = vmatpush.msra.mxu0 %v549
    %1831 = vmatpush.msra.mxu0 %v541
    %1832 = vmatpush.msra.mxu0 %v533
    %1833 = vmatpush.msra.mxu0 %v525
    %1834 = vmatpush.msra.mxu0 %v517
    %1835 = vmatpush.msra.mxu0 %v509
    %1836 = vmatpush.msra.mxu0 %v501
    %1837 = vmatpush.msra.mxu0 %v493
    %1838 = vmatpush.msra.mxu0 %v485
    %1839 = vmatpush.msra.mxu0 %v477
    %1840 = vmatpush.msra.mxu0 %v469
    %1841 = vmatpush.msra.mxu0 %v461
    %1842 = vmatpush.msra.mxu0 %v453
    %1843 = vmatmul.f32.gmra.mxu0 %v293
    %v1844 = vpop.f32.mrf.mxu0
    %v1845 = vadd.f32 %v1825, %v1844
    %1846 = vdwg.mxu0
    %1847 = vmatpush.msra.mxu0 %v701
    %1848 = vmatpush.msra.mxu0 %v693
    %1849 = vmatpush.msra.mxu0 %v685
    %1850 = vmatpush.msra.mxu0 %v677
    %1851 = vmatpush.msra.mxu0 %v669
    %1852 = vmatpush.msra.mxu0 %v661
    %1853 = vmatpush.msra.mxu0 %v653
    %1854 = vmatpush.msra.mxu0 %v645
    %1855 = vmatpush.msra.mxu0 %v637
    %1856 = vmatpush.msra.mxu0 %v629
    %1857 = vmatpush.msra.mxu0 %v621
    %1858 = vmatpush.msra.mxu0 %v613
    %1859 = vmatpush.msra.mxu0 %v605
    %1860 = vmatpush.msra.mxu0 %v597
    %1861 = vmatpush.msra.mxu0 %v589
    %1862 = vmatpush.msra.mxu0 %v581
    %1863 = vmatmul.f32.gmra.mxu0 %v294
    %v1864 = vpop.f32.mrf.mxu0
    %v1865 = vadd.f32 %v1845, %v1864
    %1866 = vdwg.mxu0
    %1867 = vmatpush.msra.mxu0 %v829
    %1868 = vmatpush.msra.mxu0 %v821
    %1869 = vmatpush.msra.mxu0 %v813
    %1870 = vmatpush.msra.mxu0 %v805
    %1871 = vmatpush.msra.mxu0 %v797
    %1872 = vmatpush.msra.mxu0 %v789
    %1873 = vmatpush.msra.mxu0 %v781
    %1874 = vmatpush.msra.mxu0 %v773
    %1875 = vmatpush.msra.mxu0 %v765
    %1876 = vmatpush.msra.mxu0 %v757
    %1877 = vmatpush.msra.mxu0 %v749
    %1878 = vmatpush.msra.mxu0 %v741
    %1879 = vmatpush.msra.mxu0 %v733
    %1880 = vmatpush.msra.mxu0 %v725
    %1881 = vmatpush.msra.mxu0 %v717
    %1882 = vmatpush.msra.mxu0 %v709
    %1883 = vmatmul.f32.gmra.mxu0 %v295
    %v1884 = vpop.f32.mrf.mxu0
    %v1885 = vadd.f32 %v1865, %v1884
    %1886 = vdwg.mxu0
    %1887 = vmatpush.msra.mxu0 %v957
    %1888 = vmatpush.msra.mxu0 %v949
    %1889 = vmatpush.msra.mxu0 %v941
    %1890 = vmatpush.msra.mxu0 %v933
    %1891 = vmatpush.msra.mxu0 %v925
    %1892 = vmatpush.msra.mxu0 %v917
    %1893 = vmatpush.msra.mxu0 %v909
    %1894 = vmatpush.msra.mxu0 %v901
    %1895 = vmatpush.msra.mxu0 %v893
    %1896 = vmatpush.msra.mxu0 %v885
    %1897 = vmatpush.msra.mxu0 %v877
    %1898 = vmatpush.msra.mxu0 %v869
    %1899 = vmatpush.msra.mxu0 %v861
    %1900 = vmatpush.msra.mxu0 %v853
    %1901 = vmatpush.msra.mxu0 %v845
    %1902 = vmatpush.msra.mxu0 %v837
    %1903 = vmatmul.f32.gmra.mxu0 %v296
    %v1904 = vpop.f32.mrf.mxu0
    %v1905 = vadd.f32 %v1885, %v1904
    %1906 = vdwg.mxu0
    %1907 = vmatpush.msra.mxu0 %v1085
    %1908 = vmatpush.msra.mxu0 %v1077
    %1909 = vmatpush.msra.mxu0 %v1069
    %1910 = vmatpush.msra.mxu0 %v1061
    %1911 = vmatpush.msra.mxu0 %v1053
    %1912 = vmatpush.msra.mxu0 %v1045
    %1913 = vmatpush.msra.mxu0 %v1037
    %1914 = vmatpush.msra.mxu0 %v1029
    %1915 = vmatpush.msra.mxu0 %v1021
    %1916 = vmatpush.msra.mxu0 %v1013
    %1917 = vmatpush.msra.mxu0 %v1005
    %1918 = vmatpush.msra.mxu0 %v997
    %1919 = vmatpush.msra.mxu0 %v989
    %1920 = vmatpush.msra.mxu0 %v981
    %1921 = vmatpush.msra.mxu0 %v973
    %1922 = vmatpush.msra.mxu0 %v965
    %1923 = vmatmul.f32.gmra.mxu0 %v297
    %v1924 = vpop.f32.mrf.mxu0
    %v1925 = vadd.f32 %v1905, %v1924
    %1926 = vdwg.mxu0
    %1927 = vmatpush.msra.mxu0 %v446
    %1928 = vmatpush.msra.mxu0 %v438
    %1929 = vmatpush.msra.mxu0 %v430
    %1930 = vmatpush.msra.mxu0 %v422
    %1931 = vmatpush.msra.mxu0 %v414
    %1932 = vmatpush.msra.mxu0 %v406
    %1933 = vmatpush.msra.mxu0 %v398
    %1934 = vmatpush.msra.mxu0 %v390
    %1935 = vmatpush.msra.mxu0 %v382
    %1936 = vmatpush.msra.mxu0 %v374
    %1937 = vmatpush.msra.mxu0 %v366
    %1938 = vmatpush.msra.mxu0 %v358
    %1939 = vmatpush.msra.mxu0 %v350
    %1940 = vmatpush.msra.mxu0 %v342
    %1941 = vmatpush.msra.mxu0 %v334
    %1942 = vmatpush.msra.mxu0 %v326
    %1943 = vmatmul.f32.gmra.mxu0 %v292
    %v1944 = vpop.f32.mrf.mxu0
    %v1945 = vadd.f32 0.0, %v1944
    %1946 = vdwg.mxu0
    %1947 = vmatpush.msra.mxu0 %v574
    %1948 = vmatpush.msra.mxu0 %v566
    %1949 = vmatpush.msra.mxu0 %v558
    %1950 = vmatpush.msra.mxu0 %v550
    %1951 = vmatpush.msra.mxu0 %v542
    %1952 = vmatpush.msra.mxu0 %v534
    %1953 = vmatpush.msra.mxu0 %v526
    %1954 = vmatpush.msra.mxu0 %v518
    %1955 = vmatpush.msra.mxu0 %v510
    %1956 = vmatpush.msra.mxu0 %v502
    %1957 = vmatpush.msra.mxu0 %v494
    %1958 = vmatpush.msra.mxu0 %v486
    %1959 = vmatpush.msra.mxu0 %v478
    %1960 = vmatpush.msra.mxu0 %v470
    %1961 = vmatpush.msra.mxu0 %v462
    %1962 = vmatpush.msra.mxu0 %v454
    %1963 = vmatmul.f32.gmra.mxu0 %v293
    %v1964 = vpop.f32.mrf.mxu0
    %v1965 = vadd.f32 %v1945, %v1964
    %1966 = vdwg.mxu0
    %1967 = vmatpush.msra.mxu0 %v702
    %1968 = vmatpush.msra.mxu0 %v694
    %1969 = vmatpush.msra.mxu0 %v686
    %1970 = vmatpush.msra.mxu0 %v678
    %1971 = vmatpush.msra.mxu0 %v670
    %1972 = vmatpush.msra.mxu0 %v662
    %1973 = vmatpush.msra.mxu0 %v654
    %1974 = vmatpush.msra.mxu0 %v646
    %1975 = vmatpush.msra.mxu0 %v638
    %1976 = vmatpush.msra.mxu0 %v630
    %1977 = vmatpush.msra.mxu0 %v622
    %1978 = vmatpush.msra.mxu0 %v614
    %1979 = vmatpush.msra.mxu0 %v606
    %1980 = vmatpush.msra.mxu0 %v598
    %1981 = vmatpush.msra.mxu0 %v590
    %1982 = vmatpush.msra.mxu0 %v582
    %1983 = vmatmul.f32.gmra.mxu0 %v294
    %v1984 = vpop.f32.mrf.mxu0
    %v1985 = vadd.f32 %v1965, %v1984
    %1986 = vdwg.mxu0
    %1987 = vmatpush.msra.mxu0 %v830
    %1988 = vmatpush.msra.mxu0 %v822
    %1989 = vmatpush.msra.mxu0 %v814
    %1990 = vmatpush.msra.mxu0 %v806
    %1991 = vmatpush.msra.mxu0 %v798
    %1992 = vmatpush.msra.mxu0 %v790
    %1993 = vmatpush.msra.mxu0 %v782
    %1994 = vmatpush.msra.mxu0 %v774
    %1995 = vmatpush.msra.mxu0 %v766
    %1996 = vmatpush.msra.mxu0 %v758
    %1997 = vmatpush.msra.mxu0 %v750
    %1998 = vmatpush.msra.mxu0 %v742
    %1999 = vmatpush.msra.mxu0 %v734
    %2000 = vmatpush.msra.mxu0 %v726
    %2001 = vmatpush.msra.mxu0 %v718
    %2002 = vmatpush.msra.mxu0 %v710
    %2003 = vmatmul.f32.gmra.mxu0 %v295
    %v2004 = vpop.f32.mrf.mxu0
    %v2005 = vadd.f32 %v1985, %v2004
    %2006 = vdwg.mxu0
    %2007 = vmatpush.msra.mxu0 %v958
    %2008 = vmatpush.msra.mxu0 %v950
    %2009 = vmatpush.msra.mxu0 %v942
    %2010 = vmatpush.msra.mxu0 %v934
    %2011 = vmatpush.msra.mxu0 %v926
    %2012 = vmatpush.msra.mxu0 %v918
    %2013 = vmatpush.msra.mxu0 %v910
    %2014 = vmatpush.msra.mxu0 %v902
    %2015 = vmatpush.msra.mxu0 %v894
    %2016 = vmatpush.msra.mxu0 %v886
    %2017 = vmatpush.msra.mxu0 %v878
    %2018 = vmatpush.msra.mxu0 %v870
    %2019 = vmatpush.msra.mxu0 %v862
    %2020 = vmatpush.msra.mxu0 %v854
    %2021 = vmatpush.msra.mxu0 %v846
    %2022 = vmatpush.msra.mxu0 %v838
    %2023 = vmatmul.f32.gmra.mxu0 %v296
    %v2024 = vpop.f32.mrf.mxu0
    %v2025 = vadd.f32 %v2005, %v2024
    %2026 = vdwg.mxu0
    %2027 = vmatpush.msra.mxu0 %v1086
    %2028 = vmatpush.msra.mxu0 %v1078
    %2029 = vmatpush.msra.mxu0 %v1070
    %2030 = vmatpush.msra.mxu0 %v1062
    %2031 = vmatpush.msra.mxu0 %v1054
    %2032 = vmatpush.msra.mxu0 %v1046
    %2033 = vmatpush.msra.mxu0 %v1038
    %2034 = vmatpush.msra.mxu0 %v1030
    %2035 = vmatpush.msra.mxu0 %v1022
    %2036 = vmatpush.msra.mxu0 %v1014
    %2037 = vmatpush.msra.mxu0 %v1006
    %2038 = vmatpush.msra.mxu0 %v998
    %2039 = vmatpush.msra.mxu0 %v990
    %2040 = vmatpush.msra.mxu0 %v982
    %2041 = vmatpush.msra.mxu0 %v974
    %2042 = vmatpush.msra.mxu0 %v966
    %2043 = vmatmul.f32.gmra.mxu0 %v297
    %v2044 = vpop.f32.mrf.mxu0
    %v2045 = vadd.f32 %v2025, %v2044
    %2046 = vdwg.mxu0
    %v2047 = vmax.f32 %v1205, 0.0
    %v2048 = vmax.f32 %v1325, 0.0
    %v2049 = vmax.f32 %v1445, 0.0
    %v2050 = vmax.f32 %v1565, 0.0
    %v2051 = vmax.f32 %v1685, 0.0
    %v2052 = vmax.f32 %v1805, 0.0
    %v2053 = vmax.f32 %v1925, 0.0
    %v2054 = vmax.f32 %v2045, 0.0
    %v2055 = vmax.f32 %v2047, %v2051
    %v2056 = vmax.f32 %v2048, %v2052
    %v2057 = vmax.f32 %v2049, %v2053
    %v2058 = vmax.f32 %v2050, %v2054
    %v2059 = vmax.f32 %v2055, %v2057
    %v2060 = vmax.f32 %v2056, %v2058
    %v2061 = vmax.f32 %v2059, %v2060
    %2063 = vrot.lane.b32.xlu0 %v2061, 64
    %v2064 = vpop.permute.xlu0 %2063
    %v2066 = vmax.f32 %v2061, %v2064
    %2068 = vrot.lane.b32.xlu0 %v2066, 96
    %v2069 = vpop.permute.xlu0 %2068
    %v2071 = vmax.f32 %v2066, %v2069
    %v2072 = vadd.f32 %v2047, %v2051
    %v2073 = vadd.f32 %v2048, %v2052
    %v2074 = vadd.f32 %v2049, %v2053
    %v2075 = vadd.f32 %v2050, %v2054
    %v2076 = vadd.f32 %v2072, %v2074
    %v2077 = vadd.f32 %v2073, %v2075
    %v2078 = vadd.f32 %v2076, %v2077
    %2080 = vrot.lane.b32.xlu0 %v2078, 64
    %v2081 = vpop.permute.xlu0 %2080
    %v2083 = vadd.f32 %v2078, %v2081
    %2085 = vrot.lane.b32.xlu0 %v2083, 96
    %v2086 = vpop.permute.xlu0 %2085
    %v2088 = vadd.f32 %v2083, %v2086
    %v2089 = vmul.f32 %v2088, 0.03125
    %v2090 = vld [vmem:[%s3] sm:$0xff]
    %v2091 = vld [vmem:[%s3 + $0x8] sm:$0xff]
    %v2092 = vld [vmem:[%s3 + $0x10] sm:$0xff]
    %v2093 = vld [vmem:[%s3 + $0x18] sm:$0xff]
    %v2094 = vld [vmem:[%s3 + $0x20] sm:$0xff]
    %v2095 = vld [vmem:[%s3 + $0x28] sm:$0xff]
    %v2096 = vld [vmem:[%s3 + $0x30] sm:$0xff]
    %v2097 = vld [vmem:[%s3 + $0x38] sm:$0xff]
    %vm2098 = vcmask 261120
    %v2100 = vsel %vm2098, %v2089, 0
    %2102 = vmatpush.msra.mxu0 0.0
    %2103 = vmatpush.msra.mxu0 0.0
    %2104 = vmatpush.msra.mxu0 0.0
    %2105 = vmatpush.msra.mxu0 0.0
    %2106 = vmatpush.msra.mxu0 0.0
    %2107 = vmatpush.msra.mxu0 0.0
    %2108 = vmatpush.msra.mxu0 0.0
    %2109 = vmatpush.msra.mxu0 0.0
    %2110 = vmatpush.msra.mxu0 0.0
    %2111 = vmatpush.msra.mxu0 0.0
    %2112 = vmatpush.msra.mxu0 0.0
    %2113 = vmatpush.msra.mxu0 0.0
    %2114 = vmatpush.msra.mxu0 %v2097
    %2115 = vmatpush.msra.mxu0 %v2096
    %2116 = vmatpush.msra.mxu0 %v2095
    %2117 = vmatpush.msra.mxu0 %v2094
    %2118 = vmatmul.f32.gmra.mxu0 %v2100
    %v2119 = vpop.f32.mrf.mxu0
    %v2120 = vadd.f32 0.0, %v2119
    %2121 = vdwg.mxu0
    %v2123 = vsel %vm2098, %v2071, 0
    %2125 = vmatpush.msra.mxu0 0.0
    %2126 = vmatpush.msra.mxu0 0.0
    %2127 = vmatpush.msra.mxu0 0.0
    %2128 = vmatpush.msra.mxu0 0.0
    %2129 = vmatpush.msra.mxu0 0.0
    %2130 = vmatpush.msra.mxu0 0.0
    %2131 = vmatpush.msra.mxu0 0.0
    %2132 = vmatpush.msra.mxu0 0.0
    %2133 = vmatpush.msra.mxu0 0.0
    %2134 = vmatpush.msra.mxu0 0.0
    %2135 = vmatpush.msra.mxu0 0.0
    %2136 = vmatpush.msra.mxu0 0.0
    %2137 = vmatpush.msra.mxu0 %v2093
    %2138 = vmatpush.msra.mxu0 %v2092
    %2139 = vmatpush.msra.mxu0 %v2091
    %2140 = vmatpush.msra.mxu0 %v2090
    %2141 = vmatmul.f32.gmra.mxu0 %v2123
    %v2142 = vpop.f32.mrf.mxu0
    %v2143 = vadd.f32 %v2120, %v2142
    %2144 = vdwg.mxu0
    %v2145 = vld [vmem:[#allocation7] sm:$0x1]
    %v2147 = vperm.slane %v2145, 0
    %v2149 = vadd.f32 %v2143, %v2147
    %v2150 = vmax.f32 %v2149, 0.0
    %v2151 = vld [vmem:[%s5] sm:$0xff]
    %v2152 = vld [vmem:[%s5 + $0x8] sm:$0xff]
    %v2153 = vld [vmem:[#allocation2] sm:$0x1]
    %v2155 = vperm.slane %v2153, 0
    %vm2157 = vcmask 130048
    %v2159 = vsel %vm2157, %v2150, 0
    %2161 = vmatpush.msra.mxu0 0.0
    %2162 = vmatpush.msra.mxu0 0.0
    %2163 = vmatpush.msra.mxu0 0.0
    %2164 = vmatpush.msra.mxu0 0.0
    %2165 = vmatpush.msra.mxu0 0.0
    %2166 = vmatpush.msra.mxu0 0.0
    %2167 = vmatpush.msra.mxu0 0.0
    %2168 = vmatpush.msra.mxu0 0.0
    %2169 = vmatpush.msra.mxu0 0.0
    %2170 = vmatpush.msra.mxu0 0.0
    %2171 = vmatpush.msra.mxu0 0.0
    %2172 = vmatpush.msra.mxu0 0.0
    %2173 = vmatpush.msra.mxu0 0.0
    %2174 = vmatpush.msra.mxu0 0.0
    %2175 = vmatpush.msra.mxu0 %v2152
    %2176 = vmatpush.msra.mxu0 %v2151
    %2177 = vmatmul.f32.gmra.mxu0 %v2159
    %v2178 = vpop.f32.mrf.mxu0
    %v2179 = vadd.f32 %v2155, %v2178
    %2180 = vdwg.mxu0
    %vm2181 = vcmask 1024
    %2182 = vst.msk [vmem:[%s7] sm:$0x3] %vm2181, %v2179
    // Predicated region
    $region42: #{cnn_forward.1} parent=1 // pred_check
      _
    $region43: #{cnn_forward.1} parent=1 // pred_check_branch
      %2184 = sbr.rel (0) target = $region45
    $region44: #{cnn_forward.1} parent=1 // pred_region
      _
    $region45: #{cnn_forward.1} parent=1 // pred_fallthru
      _
    // Predicated region
    $region46: #{cnn_forward.1} parent=1 // pred_check
      _
    $region47: #{cnn_forward.1} parent=1 // pred_check_branch
      %2186 = sbr.rel (0) target = $region49
    $region48: #{cnn_forward.1} parent=1 // pred_region
      _
    $region49: #{cnn_forward.1} parent=1 // pred_fallthru
      _
    // Predicated region
    $region50: #{cnn_forward.1} parent=1 // pred_check
      _
    $region51: #{cnn_forward.1} parent=1 // pred_check_branch
      %2188 = sbr.rel (0) target = $region53
    $region52: #{cnn_forward.1} parent=1 // pred_region
      _
    $region53: #{cnn_forward.1} parent=1 // pred_fallthru
      _
    // Predicated region
    $region54: #{cnn_forward.1} parent=1 // pred_check
      _
    $region55: #{cnn_forward.1} parent=1 // pred_check_branch
      %2190 = sbr.rel (0) target = $region57
    $region56: #{cnn_forward.1} parent=1 // pred_region
      _
    $region57: #{cnn_forward.1} parent=1 // pred_fallthru
      _
    %2191 = vsyncpa [#allocation4], 1
    %2192 = vsyncpa [#allocation6], 1

</llo_original>
